<compile_context>
chip_gen: v7x
topology: tpu7x:2x2x1
jax: 0.10.0
libtpu: 0.0.40
codegen_flags: <defaults>
</compile_context>

<pallas_src>
import math

import jax
import jax.numpy as jnp
from jax import lax
from jax.experimental import pallas as pl
from jax.experimental.pallas import tpu as pltpu


def _round_up(v: int, m: int) -> int:
    return ((v + m - 1) // m) * m


def _gelu_exact(x):
    # PyTorch nn.GELU() default = exact erf formulation (computed in f32).
    return 0.5 * x * (1.0 + lax.erf(x * 0.7071067811865476))


def _num_tensorcores() -> int:
    """How many TensorCores one pallas_call can spread a 'parallel' grid axis over."""
    try:
        kind = jax.devices()[0].device_kind.lower()
    except Exception:
        return 1
    return 2 if any(t in kind for t in ("v7", "v4", "v5p")) else 1


# --------------------------------------------------------------------------- #
# Kernel: one row-tile of the whole autoencoder forward.
# --------------------------------------------------------------------------- #
def _autoencoder_kernel(x_ref, w1f_ref, e1_ref, b1_ref, w2_ref, b2_ref,
                        w3_ref, b3_ref, w4_ref, b4_ref, rec_ref, lat_ref):
    tile_r = x_ref.shape[0]
    feat_dim = w1f_ref.shape[0]
    num_vec = e1_ref.shape[0]

    x = x_ref[...].astype(jnp.float32)                        # (tile_r, feat_dim + 1)
    feat = x[:, :feat_dim]                                    # (tile_r, feat_dim)
    vec_id = x[:, feat_dim:feat_dim + 1].astype(jnp.int32)    # (tile_r, 1), trunc like .int()

    # Embedding lookup + encoder-L1 embedding rows folded into ONE one-hot matmul:
    #   one_hot @ (emb_tbl @ w1[feat_dim:]) == Embedding(id) @ w1[feat_dim:]
    col = lax.broadcasted_iota(jnp.int32, (tile_r, num_vec), 1)
    one_hot = (col == vec_id).astype(jnp.float32)

    # Encoder layer 1: Linear(feat_dim + emb_dim -> d1) + GELU (split-K, no lane concat).
    # TODO(synk): a further micro-opt is lane-concat [feat | one_hot] with an augmented
    # (feat_dim+num_vec, d1) weight for a single MXU pass; skipped (kernel is HBM-bound).
    h = (jnp.dot(feat, w1f_ref[...], preferred_element_type=jnp.float32)
         + jnp.dot(one_hot, e1_ref[...], preferred_element_type=jnp.float32)
         + b1_ref[...])
    h = _gelu_exact(h)

    # Encoder layer 2: w2/b2 were already trimmed to latent_dim-1 in the wrapper,
    # so `lat` IS latent[..., :-1] (no in-kernel slice, no wasted column).
    lat = jnp.dot(h, w2_ref[...], preferred_element_type=jnp.float32) + b2_ref[...]

    # Decoder: Linear + GELU + Linear.
    d = _gelu_exact(jnp.dot(lat, w3_ref[...], preferred_element_type=jnp.float32)
                    + b3_ref[...])
    rec = jnp.dot(d, w4_ref[...], preferred_element_type=jnp.float32) + b4_ref[...]

    # Stores.  When the output refs are "folded" ((tile/8, 8*feat)) the reshape packs
    # 8 batch rows into the lane dim -> unmasked, lane-dense vst.  In the plain layout
    # the reshape is a no-op.
    rec_ref[...] = rec.reshape(rec_ref.shape).astype(rec_ref.dtype)
    lat_ref[...] = lat.reshape(lat_ref.shape).astype(lat_ref.dtype)


# --------------------------------------------------------------------------- #
# pallas_call wrapper
# --------------------------------------------------------------------------- #
def _run_pallas(xf, w1f, e1, b1, w2, b2, w3, b3, w4, b4, *,
                tile_r, fold, buffered, semantics, cost=None):
    n_pad, f_in = xf.shape
    lat_dim = w2.shape[1]
    out_dim = w4.shape[1]
    dtype = xf.dtype
    grid = (n_pad // tile_r,)

    const = lambda i: (0, 0)
    row_map = lambda i: (i, 0)

    if buffered:
        x_spec = pl.BlockSpec((tile_r, f_in), row_map, pipeline_mode=pl.Buffered(3))
    else:
        x_spec = pl.BlockSpec((tile_r, f_in), row_map)

    if fold:
        # 8 rows folded into lanes: identical HBM byte layout, lane-dense stores.
        rec_shape, lat_shape = (n_pad // 8, 8 * out_dim), (n_pad // 8, 8 * lat_dim)
        rec_block, lat_block = (tile_r // 8, 8 * out_dim), (tile_r // 8, 8 * lat_dim)
    else:
        rec_shape, lat_shape = (n_pad, out_dim), (n_pad, lat_dim)
        rec_block, lat_block = (tile_r, out_dim), (tile_r, lat_dim)

    rec, lat = pl.pallas_call(
        _autoencoder_kernel,
        out_shape=(jax.ShapeDtypeStruct(rec_shape, dtype),
                   jax.ShapeDtypeStruct(lat_shape, dtype)),
        grid_spec=pltpu.PrefetchScalarGridSpec(
            num_scalar_prefetch=0,
            grid=grid,
            in_specs=[
                x_spec,                                    # x tile (streamed)
                pl.BlockSpec(w1f.shape, const),            # enc L1 weight, feature rows
                pl.BlockSpec(e1.shape, const),             # folded emb_tbl @ w1[feat:, :]
                pl.BlockSpec(b1.shape, const),             # enc b1
                pl.BlockSpec(w2.shape, const),             # enc L2 weight (trimmed)
                pl.BlockSpec(b2.shape, const),             # enc b2 (trimmed)
                pl.BlockSpec(w3.shape, const),             # dec L1 weight
                pl.BlockSpec(b3.shape, const),             # dec b1
                pl.BlockSpec(w4.shape, const),             # dec L2 weight
                pl.BlockSpec(b4.shape, const),             # dec b2
            ],
            out_specs=[pl.BlockSpec(rec_block, row_map),
                       pl.BlockSpec(lat_block, row_map)],
        ),
        compiler_params=pltpu.CompilerParams(dimension_semantics=semantics),
        cost_estimate=cost,
    )(xf, w1f, e1, b1, w2, b2, w3, b3, w4, b4)

    # Free bitcast back to (rows, features) — valid in both layouts.
    return rec.reshape(n_pad, out_dim), lat.reshape(n_pad, lat_dim)


# One-time lowering probe (NOT on the hot path): pick the best (fold, buffered) variant
# Mosaic can lower for these static dims, then cache it.  Dummy args are concrete
# zeros built from shapes only, so this also works while tracing under an outer jit.
_LOWERING_CONFIG_CACHE = {}


def _select_lowering_config(key, dummy_args_fn):
    cfg = _LOWERING_CONFIG_CACHE.get(key)
    if cfg is not None:
        return cfg
    last_err = None
    for fold, buffered in ((True, True), (True, False), (False, True), (False, False)):
        try:
            out = _run_pallas(*dummy_args_fn(), tile_r=128, fold=fold,
                              buffered=buffered, semantics=("arbitrary",))
            jax.block_until_ready(out)
            cfg = (fold, buffered)
            break
        except Exception as e:          # this variant does not lower on this build
            last_err = e
            cfg = None
    if cfg is None:
        raise last_err
    _LOWERING_CONFIG_CACHE[key] = cfg
    return cfg


def vanilla_autoencoder_forward(x, params, *, tile_rows=4096):
    """VanillaAutoencoder.forward (local_latent_emb=0).

    x: (B, S, input_dim + 1); last channel is the vector id (float-encoded int).
    Returns (reconstruction (B, S, input_dim), latent[..., :-1] (B, S, latent_dim-1)).
    """
    B, S, F = x.shape
    feat_dim = F - 1
    emb_tbl = params["emb"]
    (w1, b1), (w2, b2) = params["enc"]
    (w3, b3), (w4, b4) = params["dec"]
    num_vec, emb_dim = emb_tbl.shape
    assert w1.shape[0] == feat_dim + emb_dim
    d1 = w1.shape[1]
    latent_dim = w2.shape[1]
    lat_dim = latent_dim - 1
    assert w3.shape[0] == lat_dim
    d3 = w3.shape[1]
    out_dim = w4.shape[1]

    f32 = jnp.float32
    # One-off algebraic folds (tiny matmul / slices on weights, done outside the kernel):
    #  * emb path:   one_hot @ (emb_tbl @ w1[feat_dim:]) == Embedding(id) @ w1[feat_dim:]
    #  * latent trim: the last latent column is never used downstream -> drop it from w2/b2.
    w1f = w1[:feat_dim].astype(f32)                              # (feat_dim, d1)
    e1 = jnp.dot(emb_tbl.astype(f32), w1[feat_dim:].astype(f32)) # (num_vec, d1)
    w2c = w2[:, :lat_dim].astype(f32)                            # (d1, lat_dim)
    w3c, w4c = w3.astype(f32), w4.astype(f32)
    b1r = jnp.reshape(b1, (1, d1)).astype(f32)
    b2r = jnp.reshape(b2[:lat_dim], (1, lat_dim)).astype(f32)
    b3r = jnp.reshape(b3, (1, d3)).astype(f32)
    b4r = jnp.reshape(b4, (1, out_dim)).astype(f32)

    n = B * S
    cores = _num_tensorcores()
    tile_cap = _round_up(max(128, int(tile_rows)), 128)
    if cores > 1:
        # Megacore (v7x/...): big tiles, but keep >= 2 grid steps per TensorCore when
        # the problem is large enough.
        tile_r = max(128, min(tile_cap, _round_up(pl.cdiv(n, 2 * cores), 128)))
    else:
        # Single TC (v5e/v6e): no minimum-step clamp — small problems run as one tile.
        tile_r = min(tile_cap, _round_up(n, 128))
    n_pad = _round_up(n, tile_r)
    num_steps = n_pad // tile_r
    # If each core would get <= 1 step, keep the whole grid on one core ("arbitrary")
    # so the software pipeline still overlaps DMA with compute.
    semantics = ("arbitrary",) if (cores > 1 and num_steps <= cores) else ("parallel",)

    xf = x.reshape(n, F)                       # free row-major flatten (id stays packed)
    if n_pad != n:
        xf = jnp.pad(xf, ((0, n_pad - n), (0, 0)))   # padded rows use id 0 (valid index)

    itemsize = jnp.dtype(xf.dtype).itemsize
    param_elems = (feat_dim * d1 + num_vec * d1 + d1 + d1 * lat_dim + lat_dim
                   + lat_dim * d3 + d3 + d3 * out_dim + out_dim)
    cost = pl.CostEstimate(
        flops=2 * n_pad * (feat_dim * d1 + num_vec * d1 + d1 * lat_dim
                           + lat_dim * d3 + d3 * out_dim),
        transcendentals=n_pad * (d1 + d3),
        bytes_accessed=itemsize * (n_pad * (F + out_dim + lat_dim) + param_elems),
    )

    # Static (cached) lowering-capability probe; hot path below has no try/except.
    probe_key = (feat_dim, num_vec, d1, lat_dim, d3, out_dim, str(jnp.dtype(xf.dtype)))

    def _dummy_args():
        z = lambda a: jnp.zeros(a.shape, a.dtype)
        return (jnp.zeros((3 * 128, F), xf.dtype), z(w1f), z(e1), z(b1r),
                z(w2c), z(b2r), z(w3c), z(b3r), z(w4c), z(b4r))

    fold, buffered_ok = _select_lowering_config(probe_key, _dummy_args)
    buffered = buffered_ok and num_steps >= 3     # depth-3 only pays off with >=3 steps

    rec2d, lat2d = _run_pallas(xf, w1f, e1, b1r, w2c, b2r, w3c, b3r, w4c, b4r,
                               tile_r=tile_r, fold=fold, buffered=buffered,
                               semantics=semantics, cost=cost)

    rec = rec2d[:n].reshape(B, S, out_dim)
    lat = lat2d[:n].reshape(B, S, lat_dim)
    return rec, lat


# --------------------------------------------------------------------------- #
# Parameters (mirrors VanillaAutoencoder.__init__, local_latent_emb=0 path)
# --------------------------------------------------------------------------- #
def autoencoder_dimensions(input_dim, latent_dim, num_layers_enc, num_layers_dec,
                           emb_dim):
    reduction = input_dim + emb_dim - latent_dim
    dims_enc = [input_dim + emb_dim]
    for i in range(num_layers_enc - 1):
        dims_enc.append(round(input_dim + emb_dim
                              - reduction * (i + 1) / num_layers_enc))
    dims_enc.append(latent_dim)

    output_dim, in_dim = input_dim, latent_dim
    increase = in_dim - output_dim
    dims_dec = [in_dim]
    for i in range(num_layers_dec - 1):
        dims_dec.append(round(in_dim - increase * (i + 1) / num_layers_dec))
    dims_dec.append(output_dim)
    # TODO(synk): the original forward feeds latent[..., :-1] (latent_dim-1 features)
    # into a decoder whose first Linear was built for latent_dim features (shape bug in
    # the PyTorch source); we size the decoder input to latent_dim-1 so the pass runs.
    dims_dec[0] = latent_dim - 1
    return dims_enc, dims_dec


def init_params(key, *, input_dim, latent_dim, emb_dim, num_vec,
                num_layers_enc=2, num_layers_dec=2, dtype=jnp.float32):
    dims_enc, dims_dec = autoencoder_dimensions(
        input_dim, latent_dim, num_layers_enc, num_layers_dec, emb_dim)
    # The fused kernel is specialized to Linear-GELU-Linear for both halves.
    assert len(dims_enc) == 3 and len(dims_dec) == 3

    def linear(k, fin, fout):
        kw, kb = jax.random.split(k)
        bound = 1.0 / math.sqrt(fin)
        w = jax.random.uniform(kw, (fin, fout), dtype, -bound, bound)   # [in, out]
        b = jax.random.uniform(kb, (fout,), dtype, -bound, bound)
        return w, b

    ke, k1, k2, k3, k4 = jax.random.split(key, 5)
    emb = jax.random.normal(ke, (num_vec, emb_dim), dtype)   # nn.Embedding default N(0,1)
    return {
        "emb": emb,
        "enc": [linear(k1, dims_enc[0], dims_enc[1]),
                linear(k2, dims_enc[1], dims_enc[2])],
        "dec": [linear(k3, dims_dec[0], dims_dec[1]),
                linear(k4, dims_dec[1], dims_dec[2])],
    }


def reference_forward(x, params):
    emb_tbl = params["emb"]
    (w1, b1), (w2, b2) = params["enc"]
    (w3, b3), (w4, b4) = params["dec"]
    feat = x[..., :-1]
    vec_id = x[..., -1].astype(jnp.int32)
    h = jnp.concatenate([feat, emb_tbl[vec_id]], axis=-1)
    h = _gelu_exact(h @ w1 + b1)
    latent = h @ w2 + b2
    lat_c = latent[..., :-1]
    d = _gelu_exact(lat_c @ w3 + b3)
    rec = d @ w4 + b4
    return rec, lat_c


if __name__ == "__main__":
    INPUT_DIM, LATENT_DIM, EMB_DIM, NUM_VEC = 48, 17, 16, 32
    B, S = 2, 128            # 256 rows

    key = jax.random.PRNGKey(0)
    kp, kx, ki = jax.random.split(key, 3)
    params = init_params(kp, input_dim=INPUT_DIM, latent_dim=LATENT_DIM,
                         emb_dim=EMB_DIM, num_vec=NUM_VEC)

    feats = jax.random.normal(kx, (B, S, INPUT_DIM), jnp.float32)
    ids = jax.random.randint(ki, (B, S, 1), 0, NUM_VEC).astype(jnp.float32)
    x = jnp.concatenate([feats, ids], axis=-1)        # (2, 128, 49); last col = vector id

    rec, lat = vanilla_autoencoder_forward(x, params)
    rec, lat = jax.block_until_ready((rec, lat))

    rec_ref, lat_ref = reference_forward(x, params)
    assert rec.shape == (B, S, INPUT_DIM), rec.shape
    assert lat.shape == (B, S, LATENT_DIM - 1), lat.shape
    assert jnp.allclose(rec, rec_ref, atol=2e-4, rtol=2e-4), \
        float(jnp.max(jnp.abs(rec - rec_ref)))
    assert jnp.allclose(lat, lat_ref, atol=2e-4, rtol=2e-4), \
        float(jnp.max(jnp.abs(lat - lat_ref)))
    print("KERNEL_OK")
</pallas_src>

<mosaic_0001>
module attributes {stable_mosaic.version = 11 : i64} {
  func.func @_autoencoder_kernel(%arg0: i32, %arg1: memref<128x49xf32, #tpu.memory_space<vmem>>, %arg2: memref<48x40xf32, #tpu.memory_space<vmem>>, %arg3: memref<32x40xf32, #tpu.memory_space<vmem>>, %arg4: memref<1x40xf32, #tpu.memory_space<vmem>>, %arg5: memref<40x16xf32, #tpu.memory_space<vmem>>, %arg6: memref<1x16xf32, #tpu.memory_space<vmem>>, %arg7: memref<16x32xf32, #tpu.memory_space<vmem>>, %arg8: memref<1x32xf32, #tpu.memory_space<vmem>>, %arg9: memref<32x48xf32, #tpu.memory_space<vmem>>, %arg10: memref<1x48xf32, #tpu.memory_space<vmem>>, %arg11: memref<16x384xf32, #tpu.memory_space<vmem>>, %arg12: memref<16x128xf32, #tpu.memory_space<vmem>>) attributes {dimension_semantics = [#tpu.dimension_semantics<arbitrary>], iteration_bounds = array<i64: 3>, scalar_prefetch = 0 : i64, scratch_operands = 0 : i64, tpu.core_type = #tpu.core_type<tc>, window_params = [{transform_indices = @transform_0, window_bounds = array<i64: 128, 49>}, {pipeline_mode = #tpu.pipeline_mode<synchronous>, transform_indices = @transform_1, window_bounds = array<i64: 48, 40>}, {pipeline_mode = #tpu.pipeline_mode<synchronous>, transform_indices = @transform_2, window_bounds = array<i64: 32, 40>}, {pipeline_mode = #tpu.pipeline_mode<synchronous>, transform_indices = @transform_3, window_bounds = array<i64: 1, 40>}, {pipeline_mode = #tpu.pipeline_mode<synchronous>, transform_indices = @transform_4, window_bounds = array<i64: 40, 16>}, {pipeline_mode = #tpu.pipeline_mode<synchronous>, transform_indices = @transform_5, window_bounds = array<i64: 1, 16>}, {pipeline_mode = #tpu.pipeline_mode<synchronous>, transform_indices = @transform_6, window_bounds = array<i64: 16, 32>}, {pipeline_mode = #tpu.pipeline_mode<synchronous>, transform_indices = @transform_7, window_bounds = array<i64: 1, 32>}, {pipeline_mode = #tpu.pipeline_mode<synchronous>, transform_indices = @transform_8, window_bounds = array<i64: 32, 48>}, {pipeline_mode = #tpu.pipeline_mode<synchronous>, transform_indices = @transform_9, window_bounds = array<i64: 1, 48>}, {transform_indices = @transform_10, window_bounds = array<i64: 16, 384>}, {transform_indices = @transform_11, window_bounds = array<i64: 16, 128>}]} {
    %c0 = arith.constant 0 : index
    %c0_0 = arith.constant 0 : index
    %0 = vector.load %arg1[%c0, %c0_0] : memref<128x49xf32, #tpu.memory_space<vmem>>, vector<128x49xf32>
    %1 = vector.extract_strided_slice %0 {offsets = [0, 0], sizes = [128, 48], strides = [1, 1]} : vector<128x49xf32> to vector<128x48xf32>
    %2 = vector.extract_strided_slice %0 {offsets = [0, 48], sizes = [128, 1], strides = [1, 1]} : vector<128x49xf32> to vector<128x1xf32>
    %3 = arith.fptosi %2 : vector<128x1xf32> to vector<128x1xi32>
    %4 = tpu.iota {dimensions = array<i32: 1>} : vector<128x32xi32>
    %5 = vector.broadcast %3 : vector<128x1xi32> to vector<128x32xi32>
    %6 = arith.cmpi eq, %4, %5 : vector<128x32xi32>
    %7 = arith.extui %6 : vector<128x32xi1> to vector<128x32xi32>
    %8 = arith.sitofp %7 : vector<128x32xi32> to vector<128x32xf32>
    %c0_1 = arith.constant 0 : index
    %c0_2 = arith.constant 0 : index
    %9 = vector.load %arg2[%c0_1, %c0_2] : memref<48x40xf32, #tpu.memory_space<vmem>>, vector<48x40xf32>
    %cst = arith.constant dense<0.000000e+00> : vector<128x40xf32>
    %10 = tpu.matmul %1, %9, %cst {dimension_numbers = #tpu.dot_dimension_numbers<[1], [0], [0], [1], [0, 0, 1, 1], [], []>} : vector<128x48xf32>, vector<48x40xf32>, vector<128x40xf32> -> vector<128x40xf32>
    %c0_3 = arith.constant 0 : index
    %c0_4 = arith.constant 0 : index
    %11 = vector.load %arg3[%c0_3, %c0_4] : memref<32x40xf32, #tpu.memory_space<vmem>>, vector<32x40xf32>
    %cst_5 = arith.constant dense<0.000000e+00> : vector<128x40xf32>
    %12 = tpu.matmul %8, %11, %cst_5 {dimension_numbers = #tpu.dot_dimension_numbers<[1], [0], [0], [1], [0, 0, 1, 1], [], []>} : vector<128x32xf32>, vector<32x40xf32>, vector<128x40xf32> -> vector<128x40xf32>
    %13 = arith.addf %10, %12 : vector<128x40xf32>
    %c0_6 = arith.constant 0 : index
    %c0_7 = arith.constant 0 : index
    %14 = vector.load %arg4[%c0_6, %c0_7] : memref<1x40xf32, #tpu.memory_space<vmem>>, vector<1x40xf32>
    %15 = vector.broadcast %14 : vector<1x40xf32> to vector<128x40xf32>
    %16 = arith.addf %13, %15 : vector<128x40xf32>
    %cst_8 = arith.constant 5.000000e-01 : f32
    %17 = vector.broadcast %cst_8 : f32 to vector<128x40xf32>
    %18 = arith.mulf %17, %16 : vector<128x40xf32>
    %cst_9 = arith.constant 0.707106769 : f32
    %19 = vector.broadcast %cst_9 : f32 to vector<128x40xf32>
    %20 = arith.mulf %16, %19 : vector<128x40xf32>
    %21 = math.erf %20 : vector<128x40xf32>
    %cst_10 = arith.constant 1.000000e+00 : f32
    %22 = vector.broadcast %cst_10 : f32 to vector<128x40xf32>
    %23 = arith.addf %22, %21 : vector<128x40xf32>
    %24 = arith.mulf %18, %23 : vector<128x40xf32>
    %c0_11 = arith.constant 0 : index
    %c0_12 = arith.constant 0 : index
    %25 = vector.load %arg5[%c0_11, %c0_12] : memref<40x16xf32, #tpu.memory_space<vmem>>, vector<40x16xf32>
    %cst_13 = arith.constant dense<0.000000e+00> : vector<128x16xf32>
    %26 = tpu.matmul %24, %25, %cst_13 {dimension_numbers = #tpu.dot_dimension_numbers<[1], [0], [0], [1], [0, 0, 1, 1], [], []>} : vector<128x40xf32>, vector<40x16xf32>, vector<128x16xf32> -> vector<128x16xf32>
    %c0_14 = arith.constant 0 : index
    %c0_15 = arith.constant 0 : index
    %27 = vector.load %arg6[%c0_14, %c0_15] : memref<1x16xf32, #tpu.memory_space<vmem>>, vector<1x16xf32>
    %28 = vector.broadcast %27 : vector<1x16xf32> to vector<128x16xf32>
    %29 = arith.addf %26, %28 : vector<128x16xf32>
    %c0_16 = arith.constant 0 : index
    %c0_17 = arith.constant 0 : index
    %30 = vector.load %arg7[%c0_16, %c0_17] : memref<16x32xf32, #tpu.memory_space<vmem>>, vector<16x32xf32>
    %cst_18 = arith.constant dense<0.000000e+00> : vector<128x32xf32>
    %31 = tpu.matmul %29, %30, %cst_18 {dimension_numbers = #tpu.dot_dimension_numbers<[1], [0], [0], [1], [0, 0, 1, 1], [], []>} : vector<128x16xf32>, vector<16x32xf32>, vector<128x32xf32> -> vector<128x32xf32>
    %c0_19 = arith.constant 0 : index
    %c0_20 = arith.constant 0 : index
    %32 = vector.load %arg8[%c0_19, %c0_20] : memref<1x32xf32, #tpu.memory_space<vmem>>, vector<1x32xf32>
    %33 = vector.broadcast %32 : vector<1x32xf32> to vector<128x32xf32>
    %34 = arith.addf %31, %33 : vector<128x32xf32>
    %cst_21 = arith.constant 5.000000e-01 : f32
    %35 = vector.broadcast %cst_21 : f32 to vector<128x32xf32>
    %36 = arith.mulf %35, %34 : vector<128x32xf32>
    %cst_22 = arith.constant 0.707106769 : f32
    %37 = vector.broadcast %cst_22 : f32 to vector<128x32xf32>
    %38 = arith.mulf %34, %37 : vector<128x32xf32>
    %39 = math.erf %38 : vector<128x32xf32>
    %cst_23 = arith.constant 1.000000e+00 : f32
    %40 = vector.broadcast %cst_23 : f32 to vector<128x32xf32>
    %41 = arith.addf %40, %39 : vector<128x32xf32>
    %42 = arith.mulf %36, %41 : vector<128x32xf32>
    %c0_24 = arith.constant 0 : index
    %c0_25 = arith.constant 0 : index
    %43 = vector.load %arg9[%c0_24, %c0_25] : memref<32x48xf32, #tpu.memory_space<vmem>>, vector<32x48xf32>
    %cst_26 = arith.constant dense<0.000000e+00> : vector<128x48xf32>
    %44 = tpu.matmul %42, %43, %cst_26 {dimension_numbers = #tpu.dot_dimension_numbers<[1], [0], [0], [1], [0, 0, 1, 1], [], []>} : vector<128x32xf32>, vector<32x48xf32>, vector<128x48xf32> -> vector<128x48xf32>
    %c0_27 = arith.constant 0 : index
    %c0_28 = arith.constant 0 : index
    %45 = vector.load %arg10[%c0_27, %c0_28] : memref<1x48xf32, #tpu.memory_space<vmem>>, vector<1x48xf32>
    %46 = vector.broadcast %45 : vector<1x48xf32> to vector<128x48xf32>
    %47 = arith.addf %44, %46 : vector<128x48xf32>
    %48 = vector.shape_cast %47 : vector<128x48xf32> to vector<16x384xf32>
    %c0_29 = arith.constant 0 : index
    %c0_30 = arith.constant 0 : index
    %49 = vector.load %arg11[%c0_29, %c0_30] : memref<16x384xf32, #tpu.memory_space<vmem>>, vector<16x384xf32>
    tpu.vector_store %arg11[%c0_29, %c0_30], %48 {strides = array<i32>} : memref<16x384xf32, #tpu.memory_space<vmem>>, vector<16x384xf32>,
    %50 = vector.shape_cast %29 : vector<128x16xf32> to vector<16x128xf32>
    %c0_31 = arith.constant 0 : index
    %c0_32 = arith.constant 0 : index
    %51 = vector.load %arg12[%c0_31, %c0_32] : memref<16x128xf32, #tpu.memory_space<vmem>>, vector<16x128xf32>
    tpu.vector_store %arg12[%c0_31, %c0_32], %50 {strides = array<i32>} : memref<16x128xf32, #tpu.memory_space<vmem>>, vector<16x128xf32>,
    return
  }
  func.func @transform_0(%arg0: i32) -> (i32, i32) {
    %c0_i32 = arith.constant 0 : i32
    %c0_i32_0 = arith.constant 0 : i32
    return %arg0, %c0_i32 : i32, i32
  }
  func.func @transform_1(%arg0: i32) -> (i32, i32) {
    %c0_i32 = arith.constant 0 : i32
    %c0_i32_0 = arith.constant 0 : i32
    %c0_i32_1 = arith.constant 0 : i32
    return %c0_i32, %c0_i32_0 : i32, i32
  }
  func.func @transform_2(%arg0: i32) -> (i32, i32) {
    %c0_i32 = arith.constant 0 : i32
    %c0_i32_0 = arith.constant 0 : i32
    %c0_i32_1 = arith.constant 0 : i32
    return %c0_i32, %c0_i32_0 : i32, i32
  }
  func.func @transform_3(%arg0: i32) -> (i32, i32) {
    %c0_i32 = arith.constant 0 : i32
    %c0_i32_0 = arith.constant 0 : i32
    %c0_i32_1 = arith.constant 0 : i32
    return %c0_i32, %c0_i32_0 : i32, i32
  }
  func.func @transform_4(%arg0: i32) -> (i32, i32) {
    %c0_i32 = arith.constant 0 : i32
    %c0_i32_0 = arith.constant 0 : i32
    %c0_i32_1 = arith.constant 0 : i32
    return %c0_i32, %c0_i32_0 : i32, i32
  }
  func.func @transform_5(%arg0: i32) -> (i32, i32) {
    %c0_i32 = arith.constant 0 : i32
    %c0_i32_0 = arith.constant 0 : i32
    %c0_i32_1 = arith.constant 0 : i32
    return %c0_i32, %c0_i32_0 : i32, i32
  }
  func.func @transform_6(%arg0: i32) -> (i32, i32) {
    %c0_i32 = arith.constant 0 : i32
    %c0_i32_0 = arith.constant 0 : i32
    %c0_i32_1 = arith.constant 0 : i32
    return %c0_i32, %c0_i32_0 : i32, i32
  }
  func.func @transform_7(%arg0: i32) -> (i32, i32) {
    %c0_i32 = arith.constant 0 : i32
    %c0_i32_0 = arith.constant 0 : i32
    %c0_i32_1 = arith.constant 0 : i32
    return %c0_i32, %c0_i32_0 : i32, i32
  }
  func.func @transform_8(%arg0: i32) -> (i32, i32) {
    %c0_i32 = arith.constant 0 : i32
    %c0_i32_0 = arith.constant 0 : i32
    %c0_i32_1 = arith.constant 0 : i32
    return %c0_i32, %c0_i32_0 : i32, i32
  }
  func.func @transform_9(%arg0: i32) -> (i32, i32) {
    %c0_i32 = arith.constant 0 : i32
    %c0_i32_0 = arith.constant 0 : i32
    %c0_i32_1 = arith.constant 0 : i32
    return %c0_i32, %c0_i32_0 : i32, i32
  }
  func.func @transform_10(%arg0: i32) -> (i32, i32) {
    %c0_i32 = arith.constant 0 : i32
    %c0_i32_0 = arith.constant 0 : i32
    return %arg0, %c0_i32 : i32, i32
  }
  func.func @transform_11(%arg0: i32) -> (i32, i32) {
    %c0_i32 = arith.constant 0 : i32
    %c0_i32_0 = arith.constant 0 : i32
    return %arg0, %c0_i32 : i32, i32
  }
}

module attributes {stable_mosaic.version = 11 : i64} {
  func.func @_autoencoder_kernel(%arg0: i32, %arg1: memref<128x49xf32, #tpu.memory_space<vmem>>, %arg2: memref<48x40xf32, #tpu.memory_space<vmem>>, %arg3: memref<32x40xf32, #tpu.memory_space<vmem>>, %arg4: memref<1x40xf32, #tpu.memory_space<vmem>>, %arg5: memref<40x16xf32, #tpu.memory_space<vmem>>, %arg6: memref<1x16xf32, #tpu.memory_space<vmem>>, %arg7: memref<16x32xf32, #tpu.memory_space<vmem>>, %arg8: memref<1x32xf32, #tpu.memory_space<vmem>>, %arg9: memref<32x48xf32, #tpu.memory_space<vmem>>, %arg10: memref<1x48xf32, #tpu.memory_space<vmem>>, %arg11: memref<128x48xf32, #tpu.memory_space<vmem>>, %arg12: memref<128x16xf32, #tpu.memory_space<vmem>>) attributes {dimension_semantics = [#tpu.dimension_semantics<arbitrary>], iteration_bounds = array<i64: 3>, scalar_prefetch = 0 : i64, scratch_operands = 0 : i64, tpu.core_type = #tpu.core_type<tc>, window_params = [{transform_indices = @transform_0, window_bounds = array<i64: 128, 49>}, {pipeline_mode = #tpu.pipeline_mode<synchronous>, transform_indices = @transform_1, window_bounds = array<i64: 48, 40>}, {pipeline_mode = #tpu.pipeline_mode<synchronous>, transform_indices = @transform_2, window_bounds = array<i64: 32, 40>}, {pipeline_mode = #tpu.pipeline_mode<synchronous>, transform_indices = @transform_3, window_bounds = array<i64: 1, 40>}, {pipeline_mode = #tpu.pipeline_mode<synchronous>, transform_indices = @transform_4, window_bounds = array<i64: 40, 16>}, {pipeline_mode = #tpu.pipeline_mode<synchronous>, transform_indices = @transform_5, window_bounds = array<i64: 1, 16>}, {pipeline_mode = #tpu.pipeline_mode<synchronous>, transform_indices = @transform_6, window_bounds = array<i64: 16, 32>}, {pipeline_mode = #tpu.pipeline_mode<synchronous>, transform_indices = @transform_7, window_bounds = array<i64: 1, 32>}, {pipeline_mode = #tpu.pipeline_mode<synchronous>, transform_indices = @transform_8, window_bounds = array<i64: 32, 48>}, {pipeline_mode = #tpu.pipeline_mode<synchronous>, transform_indices = @transform_9, window_bounds = array<i64: 1, 48>}, {transform_indices = @transform_10, window_bounds = array<i64: 128, 48>}, {transform_indices = @transform_11, window_bounds = array<i64: 128, 16>}]} {
    %c0 = arith.constant 0 : index
    %c0_0 = arith.constant 0 : index
    %0 = vector.load %arg1[%c0, %c0_0] : memref<128x49xf32, #tpu.memory_space<vmem>>, vector<128x49xf32>
    %1 = vector.extract_strided_slice %0 {offsets = [0, 0], sizes = [128, 48], strides = [1, 1]} : vector<128x49xf32> to vector<128x48xf32>
    %2 = vector.extract_strided_slice %0 {offsets = [0, 48], sizes = [128, 1], strides = [1, 1]} : vector<128x49xf32> to vector<128x1xf32>
    %3 = arith.fptosi %2 : vector<128x1xf32> to vector<128x1xi32>
    %4 = tpu.iota {dimensions = array<i32: 1>} : vector<128x32xi32>
    %5 = vector.broadcast %3 : vector<128x1xi32> to vector<128x32xi32>
    %6 = arith.cmpi eq, %4, %5 : vector<128x32xi32>
    %7 = arith.extui %6 : vector<128x32xi1> to vector<128x32xi32>
    %8 = arith.sitofp %7 : vector<128x32xi32> to vector<128x32xf32>
    %c0_1 = arith.constant 0 : index
    %c0_2 = arith.constant 0 : index
    %9 = vector.load %arg2[%c0_1, %c0_2] : memref<48x40xf32, #tpu.memory_space<vmem>>, vector<48x40xf32>
    %cst = arith.constant dense<0.000000e+00> : vector<128x40xf32>
    %10 = tpu.matmul %1, %9, %cst {dimension_numbers = #tpu.dot_dimension_numbers<[1], [0], [0], [1], [0, 0, 1, 1], [], []>} : vector<128x48xf32>, vector<48x40xf32>, vector<128x40xf32> -> vector<128x40xf32>
    %c0_3 = arith.constant 0 : index
    %c0_4 = arith.constant 0 : index
    %11 = vector.load %arg3[%c0_3, %c0_4] : memref<32x40xf32, #tpu.memory_space<vmem>>, vector<32x40xf32>
    %cst_5 = arith.constant dense<0.000000e+00> : vector<128x40xf32>
    %12 = tpu.matmul %8, %11, %cst_5 {dimension_numbers = #tpu.dot_dimension_numbers<[1], [0], [0], [1], [0, 0, 1, 1], [], []>} : vector<128x32xf32>, vector<32x40xf32>, vector<128x40xf32> -> vector<128x40xf32>
    %13 = arith.addf %10, %12 : vector<128x40xf32>
    %c0_6 = arith.constant 0 : index
    %c0_7 = arith.constant 0 : index
    %14 = vector.load %arg4[%c0_6, %c0_7] : memref<1x40xf32, #tpu.memory_space<vmem>>, vector<1x40xf32>
    %15 = vector.broadcast %14 : vector<1x40xf32> to vector<128x40xf32>
    %16 = arith.addf %13, %15 : vector<128x40xf32>
    %cst_8 = arith.constant 5.000000e-01 : f32
    %17 = vector.broadcast %cst_8 : f32 to vector<128x40xf32>
    %18 = arith.mulf %17, %16 : vector<128x40xf32>
    %cst_9 = arith.constant 0.707106769 : f32
    %19 = vector.broadcast %cst_9 : f32 to vector<128x40xf32>
    %20 = arith.mulf %16, %19 : vector<128x40xf32>
    %21 = math.erf %20 : vector<128x40xf32>
    %cst_10 = arith.constant 1.000000e+00 : f32
    %22 = vector.broadcast %cst_10 : f32 to vector<128x40xf32>
    %23 = arith.addf %22, %21 : vector<128x40xf32>
    %24 = arith.mulf %18, %23 : vector<128x40xf32>
    %c0_11 = arith.constant 0 : index
    %c0_12 = arith.constant 0 : index
    %25 = vector.load %arg5[%c0_11, %c0_12] : memref<40x16xf32, #tpu.memory_space<vmem>>, vector<40x16xf32>
    %cst_13 = arith.constant dense<0.000000e+00> : vector<128x16xf32>
    %26 = tpu.matmul %24, %25, %cst_13 {dimension_numbers = #tpu.dot_dimension_numbers<[1], [0], [0], [1], [0, 0, 1, 1], [], []>} : vector<128x40xf32>, vector<40x16xf32>, vector<128x16xf32> -> vector<128x16xf32>
    %c0_14 = arith.constant 0 : index
    %c0_15 = arith.constant 0 : index
    %27 = vector.load %arg6[%c0_14, %c0_15] : memref<1x16xf32, #tpu.memory_space<vmem>>, vector<1x16xf32>
    %28 = vector.broadcast %27 : vector<1x16xf32> to vector<128x16xf32>
    %29 = arith.addf %26, %28 : vector<128x16xf32>
    %c0_16 = arith.constant 0 : index
    %c0_17 = arith.constant 0 : index
    %30 = vector.load %arg7[%c0_16, %c0_17] : memref<16x32xf32, #tpu.memory_space<vmem>>, vector<16x32xf32>
    %cst_18 = arith.constant dense<0.000000e+00> : vector<128x32xf32>
    %31 = tpu.matmul %29, %30, %cst_18 {dimension_numbers = #tpu.dot_dimension_numbers<[1], [0], [0], [1], [0, 0, 1, 1], [], []>} : vector<128x16xf32>, vector<16x32xf32>, vector<128x32xf32> -> vector<128x32xf32>
    %c0_19 = arith.constant 0 : index
    %c0_20 = arith.constant 0 : index
    %32 = vector.load %arg8[%c0_19, %c0_20] : memref<1x32xf32, #tpu.memory_space<vmem>>, vector<1x32xf32>
    %33 = vector.broadcast %32 : vector<1x32xf32> to vector<128x32xf32>
    %34 = arith.addf %31, %33 : vector<128x32xf32>
    %cst_21 = arith.constant 5.000000e-01 : f32
    %35 = vector.broadcast %cst_21 : f32 to vector<128x32xf32>
    %36 = arith.mulf %35, %34 : vector<128x32xf32>
    %cst_22 = arith.constant 0.707106769 : f32
    %37 = vector.broadcast %cst_22 : f32 to vector<128x32xf32>
    %38 = arith.mulf %34, %37 : vector<128x32xf32>
    %39 = math.erf %38 : vector<128x32xf32>
    %cst_23 = arith.constant 1.000000e+00 : f32
    %40 = vector.broadcast %cst_23 : f32 to vector<128x32xf32>
    %41 = arith.addf %40, %39 : vector<128x32xf32>
    %42 = arith.mulf %36, %41 : vector<128x32xf32>
    %c0_24 = arith.constant 0 : index
    %c0_25 = arith.constant 0 : index
    %43 = vector.load %arg9[%c0_24, %c0_25] : memref<32x48xf32, #tpu.memory_space<vmem>>, vector<32x48xf32>
    %cst_26 = arith.constant dense<0.000000e+00> : vector<128x48xf32>
    %44 = tpu.matmul %42, %43, %cst_26 {dimension_numbers = #tpu.dot_dimension_numbers<[1], [0], [0], [1], [0, 0, 1, 1], [], []>} : vector<128x32xf32>, vector<32x48xf32>, vector<128x48xf32> -> vector<128x48xf32>
    %c0_27 = arith.constant 0 : index
    %c0_28 = arith.constant 0 : index
    %45 = vector.load %arg10[%c0_27, %c0_28] : memref<1x48xf32, #tpu.memory_space<vmem>>, vector<1x48xf32>
    %46 = vector.broadcast %45 : vector<1x48xf32> to vector<128x48xf32>
    %47 = arith.addf %44, %46 : vector<128x48xf32>
    %c0_29 = arith.constant 0 : index
    %c0_30 = arith.constant 0 : index
    %48 = vector.load %arg11[%c0_29, %c0_30] : memref<128x48xf32, #tpu.memory_space<vmem>>, vector<128x48xf32>
    tpu.vector_store %arg11[%c0_29, %c0_30], %47 {strides = array<i32>} : memref<128x48xf32, #tpu.memory_space<vmem>>, vector<128x48xf32>,
    %c0_31 = arith.constant 0 : index
    %c0_32 = arith.constant 0 : index
    %49 = vector.load %arg12[%c0_31, %c0_32] : memref<128x16xf32, #tpu.memory_space<vmem>>, vector<128x16xf32>
    tpu.vector_store %arg12[%c0_31, %c0_32], %29 {strides = array<i32>} : memref<128x16xf32, #tpu.memory_space<vmem>>, vector<128x16xf32>,
    return
  }
  func.func @transform_0(%arg0: i32) -> (i32, i32) {
    %c0_i32 = arith.constant 0 : i32
    %c0_i32_0 = arith.constant 0 : i32
    return %arg0, %c0_i32 : i32, i32
  }
  func.func @transform_1(%arg0: i32) -> (i32, i32) {
    %c0_i32 = arith.constant 0 : i32
    %c0_i32_0 = arith.constant 0 : i32
    %c0_i32_1 = arith.constant 0 : i32
    return %c0_i32, %c0_i32_0 : i32, i32
  }
  func.func @transform_2(%arg0: i32) -> (i32, i32) {
    %c0_i32 = arith.constant 0 : i32
    %c0_i32_0 = arith.constant 0 : i32
    %c0_i32_1 = arith.constant 0 : i32
    return %c0_i32, %c0_i32_0 : i32, i32
  }
  func.func @transform_3(%arg0: i32) -> (i32, i32) {
    %c0_i32 = arith.constant 0 : i32
    %c0_i32_0 = arith.constant 0 : i32
    %c0_i32_1 = arith.constant 0 : i32
    return %c0_i32, %c0_i32_0 : i32, i32
  }
  func.func @transform_4(%arg0: i32) -> (i32, i32) {
    %c0_i32 = arith.constant 0 : i32
    %c0_i32_0 = arith.constant 0 : i32
    %c0_i32_1 = arith.constant 0 : i32
    return %c0_i32, %c0_i32_0 : i32, i32
  }
  func.func @transform_5(%arg0: i32) -> (i32, i32) {
    %c0_i32 = arith.constant 0 : i32
    %c0_i32_0 = arith.constant 0 : i32
    %c0_i32_1 = arith.constant 0 : i32
    return %c0_i32, %c0_i32_0 : i32, i32
  }
  func.func @transform_6(%arg0: i32) -> (i32, i32) {
    %c0_i32 = arith.constant 0 : i32
    %c0_i32_0 = arith.constant 0 : i32
    %c0_i32_1 = arith.constant 0 : i32
    return %c0_i32, %c0_i32_0 : i32, i32
  }
  func.func @transform_7(%arg0: i32) -> (i32, i32) {
    %c0_i32 = arith.constant 0 : i32
    %c0_i32_0 = arith.constant 0 : i32
    %c0_i32_1 = arith.constant 0 : i32
    return %c0_i32, %c0_i32_0 : i32, i32
  }
  func.func @transform_8(%arg0: i32) -> (i32, i32) {
    %c0_i32 = arith.constant 0 : i32
    %c0_i32_0 = arith.constant 0 : i32
    %c0_i32_1 = arith.constant 0 : i32
    return %c0_i32, %c0_i32_0 : i32, i32
  }
  func.func @transform_9(%arg0: i32) -> (i32, i32) {
    %c0_i32 = arith.constant 0 : i32
    %c0_i32_0 = arith.constant 0 : i32
    %c0_i32_1 = arith.constant 0 : i32
    return %c0_i32, %c0_i32_0 : i32, i32
  }
  func.func @transform_10(%arg0: i32) -> (i32, i32) {
    %c0_i32 = arith.constant 0 : i32
    %c0_i32_0 = arith.constant 0 : i32
    return %arg0, %c0_i32 : i32, i32
  }
  func.func @transform_11(%arg0: i32) -> (i32, i32) {
    %c0_i32 = arith.constant 0 : i32
    %c0_i32_0 = arith.constant 0 : i32
    return %arg0, %c0_i32 : i32, i32
  }
}

</mosaic_0001>

<llo_original>
// kernel: tpu_custom_call.1
$region0: #{tpu_custom_call.1}
  #allocation0 [shape = 'u32[]', space=smem, size = 0x4, offset = 0x4, fixed_abs, tag = 'smem constant byte address 0x4 - core index']
  #allocation1 [shape = 'u32[144,128]{1,0:T(1,128)}', space=vmem, size = 0x12000, scoped, tag = 'internal scratch']
  %s0 = inlined_call_operand.vmem [shape: f32[384,49], index: 0, kind: input, shape index: {}]
  %s1 = inlined_call_operand.vmem [shape: f32[48,40], index: 1, kind: input, shape index: {}]
  %s2 = inlined_call_operand.vmem [shape: f32[32,40], index: 2, kind: input, shape index: {}]
  %s3 = inlined_call_operand.vmem [shape: f32[1,40], index: 3, kind: input, shape index: {}]
  %s4 = inlined_call_operand.vmem [shape: f32[40,16], index: 4, kind: input, shape index: {}]
  %s5 = inlined_call_operand.vmem [shape: f32[1,16], index: 5, kind: input, shape index: {}]
  %s6 = inlined_call_operand.vmem [shape: f32[16,32], index: 6, kind: input, shape index: {}]
  %s7 = inlined_call_operand.vmem [shape: f32[1,32], index: 7, kind: input, shape index: {}]
  %s8 = inlined_call_operand.vmem [shape: f32[32,48], index: 8, kind: input, shape index: {}]
  %s9 = inlined_call_operand.vmem [shape: f32[1,48], index: 9, kind: input, shape index: {}]
  %s10 = inlined_call_operand.vmem [shape: f32[384,48], index: 10, kind: output, shape index: {0}]
  %s11 = inlined_call_operand.vmem [shape: f32[384,16], index: 11, kind: output, shape index: {1}]
  %12 = xla_tuple %s10, %s11
  %s13 = sld [smem:[#allocation0]]
  $region81: #{tpu_custom_call.1} parent=0
    _
  %s15 = ssub.s32 1, %s13
  %s16 = scalar_select 0, %s15, %s13
  loop: start=0, step=1, limit=5
  $region2: #{tpu_custom_call.1} parent=0 // loop_pre_header
    _
  $region3: #{tpu_custom_call.1} parent=0 // loop_header
    %s18 = sphi 0, %s22
    %p19 = scmp.ge.s32.totalorder %s18, 5
    %s28 = sphi 0, %s30
    %s31 = sphi 0, %s28
    %s32 = sphi 0, %s31
    %s48 = sphi 0, %s32
    %s52 = sphi 0, %s52
    %s54 = sphi 0, %s52
    %s55 = sphi 0, %s54
    %s69 = sphi 0, %s55
    %s73 = sphi 0, %s73
    %s75 = sphi 0, %s73
    %s76 = sphi 0, %s75
    %s90 = sphi 0, %s76
    %s94 = sphi 0, %s94
    %s96 = sphi 0, %s94
    %s97 = sphi 0, %s96
    %s111 = sphi 0, %s97
    %s115 = sphi 0, %s115
    %s117 = sphi 0, %s115
    %s118 = sphi 0, %s117
    %s132 = sphi 0, %s118
    %s136 = sphi 0, %s136
    %s138 = sphi 0, %s136
    %s139 = sphi 0, %s138
    %s153 = sphi 0, %s139
    %s157 = sphi 0, %s157
    %s159 = sphi 0, %s157
    %s160 = sphi 0, %s159
    %s174 = sphi 0, %s160
    %s178 = sphi 0, %s178
    %s180 = sphi 0, %s178
    %s181 = sphi 0, %s180
    %s195 = sphi 0, %s181
    %s199 = sphi 0, %s199
    %s201 = sphi 0, %s199
    %s202 = sphi 0, %s201
    %s216 = sphi 0, %s202
    %s220 = sphi 0, %s220
    %s222 = sphi 0, %s220
    %s223 = sphi 0, %s222
    %s237 = sphi 0, %s223
    %s243 = sphi 0, %s245
    %s246 = sphi 0, %s243
    %s247 = sphi 0, %s246
    %s263 = sphi 0, %s247
    %s269 = sphi 0, %s271
    %s272 = sphi 0, %s269
    %s273 = sphi 0, %s272
    %s289 = sphi 0, %s273
  $region4: #{tpu_custom_call.1} parent=0 // loop_header_branch
    %21 = sbr.rel (%p19) target = $region8
  $region5: #{tpu_custom_call.1} parent=0 // loop_body
    %s23 = ssub.s32 %s18, 1
    %s24 = ssub.s32 %s18, 2
    %s25 = sadd.s32 %s18, 1
    %s26 = ssub.s32 %s18, %s25
    %p27 = scmp.eq.s32.totalorder %s26, 0
    %s29 = sadd.s32 %s28, 1
    %s30 = scalar_select %p27, %s28, %s29
    %p33 = pneg %p27
    %p34 = scmp.eq.s32.totalorder %s18, 2
    %p35 = por %p33, %p34
    %p36 = scmp.ne.s32.totalorder %s28, %s31
    %p37 = scmp.eq.s32.totalorder %s18, 0
    %p38 = por %p36, %p37
    %p39 = scmp.ne.s32.totalorder %s28, %s31
    %p40 = scmp.eq.s32.totalorder %s23, 2
    %p41 = por %p39, %p40
    %p42 = scmp.ne.s32.totalorder %s31, %s32
    %p43 = scmp.eq.s32.totalorder %s23, 0
    %p44 = por %p42, %p43
    %p45 = scmp.ne.s32.totalorder %s31, %s32
    %p46 = scmp.eq.s32.totalorder %s24, 2
    %p47 = por %p45, %p46
    %p49 = scmp.ne.s32.totalorder %s32, %s48
    %p50 = scmp.eq.s32.totalorder %s24, 0
    %p51 = por %p49, %p50
    %s53 = sadd.s32 %s52, 1
    %p56 = scmp.eq.s32.totalorder %s18, 2
    %p57 = scmp.ne.s32.totalorder %s52, %s54
    %p58 = scmp.eq.s32.totalorder %s18, 0
    %p59 = por %p57, %p58
    %p60 = scmp.ne.s32.totalorder %s52, %s54
    %p61 = scmp.eq.s32.totalorder %s23, 2
    %p62 = por %p60, %p61
    %p63 = scmp.ne.s32.totalorder %s54, %s55
    %p64 = scmp.eq.s32.totalorder %s23, 0
    %p65 = por %p63, %p64
    %p66 = scmp.ne.s32.totalorder %s54, %s55
    %p67 = scmp.eq.s32.totalorder %s24, 2
    %p68 = por %p66, %p67
    %p70 = scmp.ne.s32.totalorder %s55, %s69
    %p71 = scmp.eq.s32.totalorder %s24, 0
    %p72 = por %p70, %p71
    %s74 = sadd.s32 %s73, 1
    %p77 = scmp.eq.s32.totalorder %s18, 2
    %p78 = scmp.ne.s32.totalorder %s73, %s75
    %p79 = scmp.eq.s32.totalorder %s18, 0
    %p80 = por %p78, %p79
    %p81 = scmp.ne.s32.totalorder %s73, %s75
    %p82 = scmp.eq.s32.totalorder %s23, 2
    %p83 = por %p81, %p82
    %p84 = scmp.ne.s32.totalorder %s75, %s76
    %p85 = scmp.eq.s32.totalorder %s23, 0
    %p86 = por %p84, %p85
    %p87 = scmp.ne.s32.totalorder %s75, %s76
    %p88 = scmp.eq.s32.totalorder %s24, 2
    %p89 = por %p87, %p88
    %p91 = scmp.ne.s32.totalorder %s76, %s90
    %p92 = scmp.eq.s32.totalorder %s24, 0
    %p93 = por %p91, %p92
    %s95 = sadd.s32 %s94, 1
    %p98 = scmp.eq.s32.totalorder %s18, 2
    %p99 = scmp.ne.s32.totalorder %s94, %s96
    %p100 = scmp.eq.s32.totalorder %s18, 0
    %p101 = por %p99, %p100
    %p102 = scmp.ne.s32.totalorder %s94, %s96
    %p103 = scmp.eq.s32.totalorder %s23, 2
    %p104 = por %p102, %p103
    %p105 = scmp.ne.s32.totalorder %s96, %s97
    %p106 = scmp.eq.s32.totalorder %s23, 0
    %p107 = por %p105, %p106
    %p108 = scmp.ne.s32.totalorder %s96, %s97
    %p109 = scmp.eq.s32.totalorder %s24, 2
    %p110 = por %p108, %p109
    %p112 = scmp.ne.s32.totalorder %s97, %s111
    %p113 = scmp.eq.s32.totalorder %s24, 0
    %p114 = por %p112, %p113
    %s116 = sadd.s32 %s115, 1
    %p119 = scmp.eq.s32.totalorder %s18, 2
    %p120 = scmp.ne.s32.totalorder %s115, %s117
    %p121 = scmp.eq.s32.totalorder %s18, 0
    %p122 = por %p120, %p121
    %p123 = scmp.ne.s32.totalorder %s115, %s117
    %p124 = scmp.eq.s32.totalorder %s23, 2
    %p125 = por %p123, %p124
    %p126 = scmp.ne.s32.totalorder %s117, %s118
    %p127 = scmp.eq.s32.totalorder %s23, 0
    %p128 = por %p126, %p127
    %p129 = scmp.ne.s32.totalorder %s117, %s118
    %p130 = scmp.eq.s32.totalorder %s24, 2
    %p131 = por %p129, %p130
    %p133 = scmp.ne.s32.totalorder %s118, %s132
    %p134 = scmp.eq.s32.totalorder %s24, 0
    %p135 = por %p133, %p134
    %s137 = sadd.s32 %s136, 1
    %p140 = scmp.eq.s32.totalorder %s18, 2
    %p141 = scmp.ne.s32.totalorder %s136, %s138
    %p142 = scmp.eq.s32.totalorder %s18, 0
    %p143 = por %p141, %p142
    %p144 = scmp.ne.s32.totalorder %s136, %s138
    %p145 = scmp.eq.s32.totalorder %s23, 2
    %p146 = por %p144, %p145
    %p147 = scmp.ne.s32.totalorder %s138, %s139
    %p148 = scmp.eq.s32.totalorder %s23, 0
    %p149 = por %p147, %p148
    %p150 = scmp.ne.s32.totalorder %s138, %s139
    %p151 = scmp.eq.s32.totalorder %s24, 2
    %p152 = por %p150, %p151
    %p154 = scmp.ne.s32.totalorder %s139, %s153
    %p155 = scmp.eq.s32.totalorder %s24, 0
    %p156 = por %p154, %p155
    %s158 = sadd.s32 %s157, 1
    %p161 = scmp.eq.s32.totalorder %s18, 2
    %p162 = scmp.ne.s32.totalorder %s157, %s159
    %p163 = scmp.eq.s32.totalorder %s18, 0
    %p164 = por %p162, %p163
    %p165 = scmp.ne.s32.totalorder %s157, %s159
    %p166 = scmp.eq.s32.totalorder %s23, 2
    %p167 = por %p165, %p166
    %p168 = scmp.ne.s32.totalorder %s159, %s160
    %p169 = scmp.eq.s32.totalorder %s23, 0
    %p170 = por %p168, %p169
    %p171 = scmp.ne.s32.totalorder %s159, %s160
    %p172 = scmp.eq.s32.totalorder %s24, 2
    %p173 = por %p171, %p172
    %p175 = scmp.ne.s32.totalorder %s160, %s174
    %p176 = scmp.eq.s32.totalorder %s24, 0
    %p177 = por %p175, %p176
    %s179 = sadd.s32 %s178, 1
    %p182 = scmp.eq.s32.totalorder %s18, 2
    %p183 = scmp.ne.s32.totalorder %s178, %s180
    %p184 = scmp.eq.s32.totalorder %s18, 0
    %p185 = por %p183, %p184
    %p186 = scmp.ne.s32.totalorder %s178, %s180
    %p187 = scmp.eq.s32.totalorder %s23, 2
    %p188 = por %p186, %p187
    %p189 = scmp.ne.s32.totalorder %s180, %s181
    %p190 = scmp.eq.s32.totalorder %s23, 0
    %p191 = por %p189, %p190
    %p192 = scmp.ne.s32.totalorder %s180, %s181
    %p193 = scmp.eq.s32.totalorder %s24, 2
    %p194 = por %p192, %p193
    %p196 = scmp.ne.s32.totalorder %s181, %s195
    %p197 = scmp.eq.s32.totalorder %s24, 0
    %p198 = por %p196, %p197
    %s200 = sadd.s32 %s199, 1
    %p203 = scmp.eq.s32.totalorder %s18, 2
    %p204 = scmp.ne.s32.totalorder %s199, %s201
    %p205 = scmp.eq.s32.totalorder %s18, 0
    %p206 = por %p204, %p205
    %p207 = scmp.ne.s32.totalorder %s199, %s201
    %p208 = scmp.eq.s32.totalorder %s23, 2
    %p209 = por %p207, %p208
    %p210 = scmp.ne.s32.totalorder %s201, %s202
    %p211 = scmp.eq.s32.totalorder %s23, 0
    %p212 = por %p210, %p211
    %p213 = scmp.ne.s32.totalorder %s201, %s202
    %p214 = scmp.eq.s32.totalorder %s24, 2
    %p215 = por %p213, %p214
    %p217 = scmp.ne.s32.totalorder %s202, %s216
    %p218 = scmp.eq.s32.totalorder %s24, 0
    %p219 = por %p217, %p218
    %s221 = sadd.s32 %s220, 1
    %p224 = scmp.eq.s32.totalorder %s18, 2
    %p225 = scmp.ne.s32.totalorder %s220, %s222
    %p226 = scmp.eq.s32.totalorder %s18, 0
    %p227 = por %p225, %p226
    %p228 = scmp.ne.s32.totalorder %s220, %s222
    %p229 = scmp.eq.s32.totalorder %s23, 2
    %p230 = por %p228, %p229
    %p231 = scmp.ne.s32.totalorder %s222, %s223
    %p232 = scmp.eq.s32.totalorder %s23, 0
    %p233 = por %p231, %p232
    %p234 = scmp.ne.s32.totalorder %s222, %s223
    %p235 = scmp.eq.s32.totalorder %s24, 2
    %p236 = por %p234, %p235
    %p238 = scmp.ne.s32.totalorder %s223, %s237
    %p239 = scmp.eq.s32.totalorder %s24, 0
    %p240 = por %p238, %p239
    %s241 = ssub.s32 %s18, %s25
    %p242 = scmp.eq.s32.totalorder %s241, 0
    %s244 = sadd.s32 %s243, 1
    %s245 = scalar_select %p242, %s243, %s244
    %p248 = pneg %p242
    %p249 = scmp.eq.s32.totalorder %s18, 2
    %p250 = por %p248, %p249
    %p251 = scmp.ne.s32.totalorder %s243, %s246
    %p252 = scmp.eq.s32.totalorder %s18, 0
    %p253 = por %p251, %p252
    %p254 = scmp.ne.s32.totalorder %s243, %s246
    %p255 = scmp.eq.s32.totalorder %s23, 2
    %p256 = por %p254, %p255
    %p257 = scmp.ne.s32.totalorder %s246, %s247
    %p258 = scmp.eq.s32.totalorder %s23, 0
    %p259 = por %p257, %p258
    %p260 = scmp.ne.s32.totalorder %s246, %s247
    %p261 = scmp.eq.s32.totalorder %s24, 2
    %p262 = por %p260, %p261
    %p264 = scmp.ne.s32.totalorder %s247, %s263
    %p265 = scmp.eq.s32.totalorder %s24, 0
    %p266 = por %p264, %p265
    %s267 = ssub.s32 %s18, %s25
    %p268 = scmp.eq.s32.totalorder %s267, 0
    %s270 = sadd.s32 %s269, 1
    %s271 = scalar_select %p268, %s269, %s270
    %p274 = pneg %p268
    %p275 = scmp.eq.s32.totalorder %s18, 2
    %p276 = por %p274, %p275
    %p277 = scmp.ne.s32.totalorder %s269, %s272
    %p278 = scmp.eq.s32.totalorder %s18, 0
    %p279 = por %p277, %p278
    %p280 = scmp.ne.s32.totalorder %s269, %s272
    %p281 = scmp.eq.s32.totalorder %s23, 2
    %p282 = por %p280, %p281
    %p283 = scmp.ne.s32.totalorder %s272, %s273
    %p284 = scmp.eq.s32.totalorder %s23, 0
    %p285 = por %p283, %p284
    %p286 = scmp.ne.s32.totalorder %s272, %s273
    %p287 = scmp.eq.s32.totalorder %s24, 2
    %p288 = por %p286, %p287
    %p290 = scmp.ne.s32.totalorder %s273, %s289
    %p291 = scmp.eq.s32.totalorder %s24, 0
    %p292 = por %p290, %p291
    %p293 = scmp.le.s32.totalorder 1, %s18
    %p294 = scmp.lt.s32.totalorder %s18, 4
    %p295 = pnand %p293, %p294
    %p296 = pneg %p295
    // Predicated region
    $region9: #{tpu_custom_call.1} parent=5 // pred_check
      _
    $region10: #{tpu_custom_call.1} parent=5 // pred_check_branch
      %298 = sbr.rel (%p295) target = $region12
    $region11: #{tpu_custom_call.1} parent=5 // pred_region
      %s299 = ssub.s32 %s18, 1
      // Predicated region
      $region13: #{tpu_custom_call.1} parent=11 // pred_check
        %p300 = pneg %p65
      $region14: #{tpu_custom_call.1} parent=11 // pred_check_branch
        %302 = sbr.rel (%p300) target = $region16
      $region15: #{tpu_custom_call.1} parent=11 // pred_region
        _
      $region16: #{tpu_custom_call.1} parent=11 // pred_fallthru
        _
      // Predicated region
      $region17: #{tpu_custom_call.1} parent=11 // pred_check
        %p303 = pneg %p86
      $region18: #{tpu_custom_call.1} parent=11 // pred_check_branch
        %305 = sbr.rel (%p303) target = $region20
      $region19: #{tpu_custom_call.1} parent=11 // pred_region
        _
      $region20: #{tpu_custom_call.1} parent=11 // pred_fallthru
        _
      // Predicated region
      $region21: #{tpu_custom_call.1} parent=11 // pred_check
        %p306 = pneg %p107
      $region22: #{tpu_custom_call.1} parent=11 // pred_check_branch
        %308 = sbr.rel (%p306) target = $region24
      $region23: #{tpu_custom_call.1} parent=11 // pred_region
        _
      $region24: #{tpu_custom_call.1} parent=11 // pred_fallthru
        _
      // Predicated region
      $region25: #{tpu_custom_call.1} parent=11 // pred_check
        %p309 = pneg %p128
      $region26: #{tpu_custom_call.1} parent=11 // pred_check_branch
        %311 = sbr.rel (%p309) target = $region28
      $region27: #{tpu_custom_call.1} parent=11 // pred_region
        _
      $region28: #{tpu_custom_call.1} parent=11 // pred_fallthru
        _
      // Predicated region
      $region29: #{tpu_custom_call.1} parent=11 // pred_check
        %p312 = pneg %p149
      $region30: #{tpu_custom_call.1} parent=11 // pred_check_branch
        %314 = sbr.rel (%p312) target = $region32
      $region31: #{tpu_custom_call.1} parent=11 // pred_region
        _
      $region32: #{tpu_custom_call.1} parent=11 // pred_fallthru
        _
      // Predicated region
      $region33: #{tpu_custom_call.1} parent=11 // pred_check
        %p315 = pneg %p170
      $region34: #{tpu_custom_call.1} parent=11 // pred_check_branch
        %317 = sbr.rel (%p315) target = $region36
      $region35: #{tpu_custom_call.1} parent=11 // pred_region
        _
      $region36: #{tpu_custom_call.1} parent=11 // pred_fallthru
        _
      // Predicated region
      $region37: #{tpu_custom_call.1} parent=11 // pred_check
        %p318 = pneg %p191
      $region38: #{tpu_custom_call.1} parent=11 // pred_check_branch
        %320 = sbr.rel (%p318) target = $region40
      $region39: #{tpu_custom_call.1} parent=11 // pred_region
        _
      $region40: #{tpu_custom_call.1} parent=11 // pred_fallthru
        _
      // Predicated region
      $region41: #{tpu_custom_call.1} parent=11 // pred_check
        %p321 = pneg %p212
      $region42: #{tpu_custom_call.1} parent=11 // pred_check_branch
        %323 = sbr.rel (%p321) target = $region44
      $region43: #{tpu_custom_call.1} parent=11 // pred_region
        _
      $region44: #{tpu_custom_call.1} parent=11 // pred_fallthru
        _
      // Predicated region
      $region45: #{tpu_custom_call.1} parent=11 // pred_check
        %p324 = pneg %p233
      $region46: #{tpu_custom_call.1} parent=11 // pred_check_branch
        %326 = sbr.rel (%p324) target = $region48
      $region47: #{tpu_custom_call.1} parent=11 // pred_region
        _
      $region48: #{tpu_custom_call.1} parent=11 // pred_fallthru
        _
    $region12: #{tpu_custom_call.1} parent=5 // pred_fallthru
      _
    %p327 = scmp.lt.s32.totalorder %s18, 3
    // Predicated region
    $region49: #{tpu_custom_call.1} parent=5 // pred_check
      %p328 = pneg %p327
    $region50: #{tpu_custom_call.1} parent=5 // pred_check_branch
      %330 = sbr.rel (%p328) target = $region52
    $region51: #{tpu_custom_call.1} parent=5 // pred_region
      // Predicated region
      $region53: #{tpu_custom_call.1} parent=51 // pred_check
        %p331 = pneg %p38
      $region54: #{tpu_custom_call.1} parent=51 // pred_check_branch
        %333 = sbr.rel (%p331) target = $region56
      $region55: #{tpu_custom_call.1} parent=51 // pred_region
        %s334 = smul.u32 16, %s18
        %p335 = scmp.lt.s32.totalorder %s334, 47
        %s336 = scalar_select %p335, %s334, 47
        %s337 = smul.addr %s336, 8
        %s338 = scalar_lea.vmem %s0, %s337
        %s339 = smul.u32 16, %s18
      $region56: #{tpu_custom_call.1} parent=51 // pred_fallthru
        _
    $region52: #{tpu_custom_call.1} parent=5 // pred_fallthru
      _
    %p340 = scmp.le.s32.totalorder 1, %s18
    %p341 = scmp.lt.s32.totalorder %s18, 4
    %p342 = pnand %p340, %p341
    %p343 = pneg %p342
    // Predicated region
    $region57: #{tpu_custom_call.1} parent=5 // pred_check
      _
    $region58: #{tpu_custom_call.1} parent=5 // pred_check_branch
      %345 = sbr.rel (%p342) target = $region60
    $region59: #{tpu_custom_call.1} parent=5 // pred_region
      %s346 = ssub.s32 %s18, 1
      %s347 = smul.u32 16, %s23
      %p348 = scmp.lt.s32.totalorder %s347, 47
      %s349 = scalar_select %p348, %s347, 47
      %s350 = smul.addr %s349, 8
      %s351 = scalar_lea.vmem %s0, %s350
      %p352 = pneg %p44
      %p353 = pneg %p41
      %p354 = pneg %p65
      %p355 = pneg %p62
      %p356 = pneg %p86
      %p357 = pneg %p83
      %p358 = pneg %p107
      %p359 = pneg %p104
      %p360 = pneg %p128
      %p361 = pneg %p125
      %p362 = pneg %p149
      %p363 = pneg %p146
      %p364 = pneg %p170
      %p365 = pneg %p167
      %p366 = pneg %p191
      %p367 = pneg %p188
      %p368 = pneg %p212
      %p369 = pneg %p209
      %p370 = pneg %p233
      %p371 = pneg %p230
      %p372 = pneg %p259
      %p373 = pneg %p256
      %s374 = smul.u32 16, %s23
      %p375 = scmp.lt.s32.totalorder %s374, 47
      %s376 = scalar_select %p375, %s374, 47
      %s377 = smul.addr %s376, 8
      %s378 = scalar_lea.vmem %s10, %s377
      %p379 = pneg %p285
      %p380 = pneg %p282
      %s381 = smul.u32 16, %s23
      %p382 = scmp.lt.s32.totalorder %s381, 47
      %s383 = scalar_select %p382, %s381, 47
      %s384 = smul.addr %s383, 8
      %s385 = scalar_lea.vmem %s11, %s384
      %s386 = smul.u32 16, %s23
      %p387 = scmp.lt.s32.totalorder %s386, 47
      %s388 = scalar_select %p387, %s386, 47
      %s389 = smul.addr %s388, 8
      %s390 = scalar_lea.vmem %s0, %s389
      %s391 = smul.u32 16, %s23
      %s392 = smul.u32 16, %s23
      %p393 = scmp.lt.s32.totalorder %s392, 47
      %s394 = scalar_select %p393, %s392, 47
      %s395 = smul.addr %s394, 8
      %s396 = scalar_lea.vmem %s10, %s395
      %s397 = smul.u32 16, %s23
      %s398 = smul.u32 16, %s23
      %p399 = scmp.lt.s32.totalorder %s398, 47
      %s400 = scalar_select %p399, %s398, 47
      %s401 = smul.addr %s400, 8
      %s402 = scalar_lea.vmem %s11, %s401
      %s403 = smul.u32 16, %s23
      %v404 = vld [vmem:[%s390] sm:$0xff]
      %v405 = vld [vmem:[%s390 + $0x8] sm:$0xff]
      %v406 = vld [vmem:[%s390 + $0x10] sm:$0xff]
      %v407 = vld [vmem:[%s390 + $0x18] sm:$0xff]
      %v408 = vld [vmem:[%s390 + $0x20] sm:$0xff]
      %v409 = vld [vmem:[%s390 + $0x28] sm:$0xff]
      %v410 = vld [vmem:[%s390 + $0x30] sm:$0xff]
      %v411 = vld [vmem:[%s390 + $0x38] sm:$0xff]
      %v412 = vld [vmem:[%s390 + $0x40] sm:$0xff]
      %v413 = vld [vmem:[%s390 + $0x48] sm:$0xff]
      %v414 = vld [vmem:[%s390 + $0x50] sm:$0xff]
      %v415 = vld [vmem:[%s390 + $0x58] sm:$0xff]
      %v416 = vld [vmem:[%s390 + $0x60] sm:$0xff]
      %v417 = vld [vmem:[%s390 + $0x68] sm:$0xff]
      %v418 = vld [vmem:[%s390 + $0x70] sm:$0xff]
      %v419 = vld [vmem:[%s390 + $0x78] sm:$0xff]
      %v420 = vcvt.f32.s32.to.zero.pseudo %v404
      %v421 = vcvt.f32.s32.to.zero.pseudo %v405
      %v422 = vcvt.f32.s32.to.zero.pseudo %v406
      %v423 = vcvt.f32.s32.to.zero.pseudo %v407
      %v424 = vcvt.f32.s32.to.zero.pseudo %v408
      %v425 = vcvt.f32.s32.to.zero.pseudo %v409
      %v426 = vcvt.f32.s32.to.zero.pseudo %v410
      %v427 = vcvt.f32.s32.to.zero.pseudo %v411
      %v428 = vcvt.f32.s32.to.zero.pseudo %v412
      %v429 = vcvt.f32.s32.to.zero.pseudo %v413
      %v430 = vcvt.f32.s32.to.zero.pseudo %v414
      %v431 = vcvt.f32.s32.to.zero.pseudo %v415
      %v432 = vcvt.f32.s32.to.zero.pseudo %v416
      %v433 = vcvt.f32.s32.to.zero.pseudo %v417
      %v434 = vcvt.f32.s32.to.zero.pseudo %v418
      %v435 = vcvt.f32.s32.to.zero.pseudo %v419
      %v436 = vlaneseq
      %v437 = vand.u32 %v436, 127
      %438 = vset.pattern.permute.xlu0 48
      %439 = vperm.xlu0 %438, %v420
      %v440 = vpop.permute.xlu0 %439
      %441 = vset.pattern.permute.xlu0 48
      %442 = vperm.xlu0 %441, %v421
      %v443 = vpop.permute.xlu0 %442
      %444 = vset.pattern.permute.xlu0 48
      %445 = vperm.xlu0 %444, %v422
      %v446 = vpop.permute.xlu0 %445
      %447 = vset.pattern.permute.xlu0 48
      %448 = vperm.xlu0 %447, %v423
      %v449 = vpop.permute.xlu0 %448
      %450 = vset.pattern.permute.xlu0 48
      %451 = vperm.xlu0 %450, %v424
      %v452 = vpop.permute.xlu0 %451
      %453 = vset.pattern.permute.xlu0 48
      %454 = vperm.xlu0 %453, %v425
      %v455 = vpop.permute.xlu0 %454
      %456 = vset.pattern.permute.xlu0 48
      %457 = vperm.xlu0 %456, %v426
      %v458 = vpop.permute.xlu0 %457
      %459 = vset.pattern.permute.xlu0 48
      %460 = vperm.xlu0 %459, %v427
      %v461 = vpop.permute.xlu0 %460
      %462 = vset.pattern.permute.xlu0 48
      %463 = vperm.xlu0 %462, %v428
      %v464 = vpop.permute.xlu0 %463
      %465 = vset.pattern.permute.xlu0 48
      %466 = vperm.xlu0 %465, %v429
      %v467 = vpop.permute.xlu0 %466
      %468 = vset.pattern.permute.xlu0 48
      %469 = vperm.xlu0 %468, %v430
      %v470 = vpop.permute.xlu0 %469
      %471 = vset.pattern.permute.xlu0 48
      %472 = vperm.xlu0 %471, %v431
      %v473 = vpop.permute.xlu0 %472
      %474 = vset.pattern.permute.xlu0 48
      %475 = vperm.xlu0 %474, %v432
      %v476 = vpop.permute.xlu0 %475
      %477 = vset.pattern.permute.xlu0 48
      %478 = vperm.xlu0 %477, %v433
      %v479 = vpop.permute.xlu0 %478
      %480 = vset.pattern.permute.xlu0 48
      %481 = vperm.xlu0 %480, %v434
      %v482 = vpop.permute.xlu0 %481
      %483 = vset.pattern.permute.xlu0 48
      %484 = vperm.xlu0 %483, %v435
      %v485 = vpop.permute.xlu0 %484
      %vm486 = vcmp.eq.s32.totalorder %v437, %v440
      %vm487 = vcmp.eq.s32.totalorder %v437, %v443
      %vm488 = vcmp.eq.s32.totalorder %v437, %v446
      %vm489 = vcmp.eq.s32.totalorder %v437, %v449
      %vm490 = vcmp.eq.s32.totalorder %v437, %v452
      %vm491 = vcmp.eq.s32.totalorder %v437, %v455
      %vm492 = vcmp.eq.s32.totalorder %v437, %v458
      %vm493 = vcmp.eq.s32.totalorder %v437, %v461
      %vm494 = vcmp.eq.s32.totalorder %v437, %v464
      %vm495 = vcmp.eq.s32.totalorder %v437, %v467
      %vm496 = vcmp.eq.s32.totalorder %v437, %v470
      %vm497 = vcmp.eq.s32.totalorder %v437, %v473
      %vm498 = vcmp.eq.s32.totalorder %v437, %v476
      %vm499 = vcmp.eq.s32.totalorder %v437, %v479
      %vm500 = vcmp.eq.s32.totalorder %v437, %v482
      %vm501 = vcmp.eq.s32.totalorder %v437, %v485
      %v502 = vsel %vm486, 1, 0
      %v503 = vsel %vm487, 1, 0
      %v504 = vsel %vm488, 1, 0
      %v505 = vsel %vm489, 1, 0
      %v506 = vsel %vm490, 1, 0
      %v507 = vsel %vm491, 1, 0
      %v508 = vsel %vm492, 1, 0
      %v509 = vsel %vm493, 1, 0
      %v510 = vsel %vm494, 1, 0
      %v511 = vsel %vm495, 1, 0
      %v512 = vsel %vm496, 1, 0
      %v513 = vsel %vm497, 1, 0
      %v514 = vsel %vm498, 1, 0
      %v515 = vsel %vm499, 1, 0
      %v516 = vsel %vm500, 1, 0
      %v517 = vsel %vm501, 1, 0
      %v518 = vcvt.s32.f32 %v502
      %v519 = vcvt.s32.f32 %v503
      %v520 = vcvt.s32.f32 %v504
      %v521 = vcvt.s32.f32 %v505
      %v522 = vcvt.s32.f32 %v506
      %v523 = vcvt.s32.f32 %v507
      %v524 = vcvt.s32.f32 %v508
      %v525 = vcvt.s32.f32 %v509
      %v526 = vcvt.s32.f32 %v510
      %v527 = vcvt.s32.f32 %v511
      %v528 = vcvt.s32.f32 %v512
      %v529 = vcvt.s32.f32 %v513
      %v530 = vcvt.s32.f32 %v514
      %v531 = vcvt.s32.f32 %v515
      %v532 = vcvt.s32.f32 %v516
      %v533 = vcvt.s32.f32 %v517
      %v534 = vld [vmem:[%s1] sm:$0xff]
      %v535 = vld [vmem:[%s1 + $0x8] sm:$0xff]
      %v536 = vld [vmem:[%s1 + $0x10] sm:$0xff]
      %v537 = vld [vmem:[%s1 + $0x18] sm:$0xff]
      %v538 = vld [vmem:[%s1 + $0x20] sm:$0xff]
      %v539 = vld [vmem:[%s1 + $0x28] sm:$0xff]
      %v540 = vld [vmem:[%s2] sm:$0xff]
      %v541 = vld [vmem:[%s2 + $0x8] sm:$0xff]
      %v542 = vld [vmem:[%s2 + $0x10] sm:$0xff]
      %v543 = vld [vmem:[%s2 + $0x18] sm:$0xff]
      %vm544 = vcmask 261120
      %v546 = vsel %vm544, %v518, 0
      %v549 = vsel %vm544, %v519, 0
      %v552 = vsel %vm544, %v520, 0
      %v555 = vsel %vm544, %v521, 0
      %v558 = vsel %vm544, %v522, 0
      %v561 = vsel %vm544, %v523, 0
      %v564 = vsel %vm544, %v524, 0
      %v567 = vsel %vm544, %v525, 0
      %v570 = vsel %vm544, %v526, 0
      %v573 = vsel %vm544, %v527, 0
      %v576 = vsel %vm544, %v528, 0
      %v579 = vsel %vm544, %v529, 0
      %v582 = vsel %vm544, %v530, 0
      %v585 = vsel %vm544, %v531, 0
      %v588 = vsel %vm544, %v532, 0
      %v591 = vsel %vm544, %v533, 0
      %593 = vmatprep.subr.mxu0 0.0
      %594 = vmatpush1.msra.mxu0 %v540
      %595 = vmatprep.subr.mxu0 0.0
      %596 = vmatpush1.msra.mxu0 %v541
      %597 = vmatprep.subr.mxu0 0.0
      %598 = vmatpush1.msra.mxu0 %v542
      %599 = vmatprep.subr.mxu0 0.0
      %600 = vmatpush1.msra.mxu0 %v543
      %601 = vmatprep.subr.mxu0 0.0
      %602 = vmatpush1.msra.mxu0 0.0
      %603 = vmatprep.subr.mxu0 0.0
      %604 = vmatpush1.msra.mxu0 0.0
      %605 = vmatprep.subr.mxu0 0.0
      %606 = vmatpush1.msra.mxu0 0.0
      %607 = vmatprep.subr.mxu0 0.0
      %608 = vmatpush1.msra.mxu0 0.0
      %609 = vmatprep.subr.mxu0 0.0
      %610 = vmatpush1.msra.mxu0 0.0
      %611 = vmatprep.subr.mxu0 0.0
      %612 = vmatpush1.msra.mxu0 0.0
      %613 = vmatprep.subr.mxu0 0.0
      %614 = vmatpush1.msra.mxu0 0.0
      %615 = vmatprep.subr.mxu0 0.0
      %616 = vmatpush1.msra.mxu0 0.0
      %617 = vmatprep.subr.mxu0 0.0
      %618 = vmatpush1.msra.mxu0 0.0
      %619 = vmatprep.subr.mxu0 0.0
      %620 = vmatpush1.msra.mxu0 0.0
      %621 = vmatprep.subr.mxu0 0.0
      %622 = vmatpush1.msra.mxu0 0.0
      %623 = vmatprep.subr.mxu0 0.0
      %624 = vmatpush1.msra.mxu0 0.0
      %625 = vmatprep.subr.mxu0 0.0
      %626 = vmatpush1.msra.mxu0 0.0
      %627 = vmatprep.subr.mxu0 0.0
      %628 = vmatpush1.msra.mxu0 0.0
      %629 = vmatprep.subr.mxu0 0.0
      %630 = vmatpush1.msra.mxu0 0.0
      %631 = vmatprep.subr.mxu0 0.0
      %632 = vmatpush1.msra.mxu0 0.0
      %633 = vmatprep.subr.mxu0 0.0
      %634 = vmatpush1.msra.mxu0 0.0
      %635 = vmatprep.subr.mxu0 0.0
      %636 = vmatpush1.msra.mxu0 0.0
      %637 = vmatprep.subr.mxu0 0.0
      %638 = vmatpush1.msra.mxu0 0.0
      %639 = vmatprep.subr.mxu0 0.0
      %640 = vmatpush1.msra.mxu0 0.0
      %641 = vmatprep.subr.mxu0 0.0
      %642 = vmatpush1.msra.mxu0 0.0
      %643 = vmatprep.subr.mxu0 0.0
      %644 = vmatpush1.msra.mxu0 0.0
      %645 = vmatprep.subr.mxu0 0.0
      %646 = vmatpush1.msra.mxu0 0.0
      %647 = vmatprep.subr.mxu0 0.0
      %648 = vmatpush1.msra.mxu0 0.0
      %649 = vmatprep.subr.mxu0 0.0
      %650 = vmatpush1.msra.mxu0 0.0
      %651 = vmatprep.subr.mxu0 0.0
      %652 = vmatpush1.msra.mxu0 0.0
      %653 = vmatprep.subr.mxu0 0.0
      %654 = vmatpush1.msra.mxu0 0.0
      %655 = vmatprep.subr.mxu0 0.0
      %656 = vmatpush1.msra.mxu0 0.0
      %657 = vmatprep.mubr.f32.mxu0 0.0
      %658 = vmatmul.mubr.f32.gmra.mrb[0].mxu0 %v546
      %v659 = vpop.f32.mrb[0].mxu0
      %v660 = vadd.f32 0.0, %v659
      %v661 = vpop.f32.mrb[0].mxu0
      %662 = vmatprep.mubr.f32.mxu0 0.0
      %663 = vmatmul.mubr.f32.gmra.mrb[0].mxu0 %v549
      %v664 = vpop.f32.mrb[0].mxu0
      %v665 = vadd.f32 0.0, %v664
      %v666 = vpop.f32.mrb[0].mxu0
      %667 = vmatprep.mubr.f32.mxu0 0.0
      %668 = vmatmul.mubr.f32.gmra.mrb[0].mxu0 %v552
      %v669 = vpop.f32.mrb[0].mxu0
      %v670 = vadd.f32 0.0, %v669
      %v671 = vpop.f32.mrb[0].mxu0
      %672 = vmatprep.mubr.f32.mxu0 0.0
      %673 = vmatmul.mubr.f32.gmra.mrb[0].mxu0 %v555
      %v674 = vpop.f32.mrb[0].mxu0
      %v675 = vadd.f32 0.0, %v674
      %v676 = vpop.f32.mrb[0].mxu0
      %677 = vmatprep.mubr.f32.mxu0 0.0
      %678 = vmatmul.mubr.f32.gmra.mrb[0].mxu0 %v558
      %v679 = vpop.f32.mrb[0].mxu0
      %v680 = vadd.f32 0.0, %v679
      %v681 = vpop.f32.mrb[0].mxu0
      %682 = vmatprep.mubr.f32.mxu0 0.0
      %683 = vmatmul.mubr.f32.gmra.mrb[0].mxu0 %v561
      %v684 = vpop.f32.mrb[0].mxu0
      %v685 = vadd.f32 0.0, %v684
      %v686 = vpop.f32.mrb[0].mxu0
      %687 = vmatprep.mubr.f32.mxu0 0.0
      %688 = vmatmul.mubr.f32.gmra.mrb[0].mxu0 %v564
      %v689 = vpop.f32.mrb[0].mxu0
      %v690 = vadd.f32 0.0, %v689
      %v691 = vpop.f32.mrb[0].mxu0
      %692 = vmatprep.mubr.f32.mxu0 0.0
      %693 = vmatmul.mubr.f32.gmra.mrb[0].mxu0 %v567
      %v694 = vpop.f32.mrb[0].mxu0
      %v695 = vadd.f32 0.0, %v694
      %v696 = vpop.f32.mrb[0].mxu0
      %697 = vmatprep.mubr.f32.mxu0 0.0
      %698 = vmatmul.mubr.f32.gmra.mrb[0].mxu0 %v570
      %v699 = vpop.f32.mrb[0].mxu0
      %v700 = vadd.f32 0.0, %v699
      %v701 = vpop.f32.mrb[0].mxu0
      %702 = vmatprep.mubr.f32.mxu0 0.0
      %703 = vmatmul.mubr.f32.gmra.mrb[0].mxu0 %v573
      %v704 = vpop.f32.mrb[0].mxu0
      %v705 = vadd.f32 0.0, %v704
      %v706 = vpop.f32.mrb[0].mxu0
      %707 = vmatprep.mubr.f32.mxu0 0.0
      %708 = vmatmul.mubr.f32.gmra.mrb[0].mxu0 %v576
      %v709 = vpop.f32.mrb[0].mxu0
      %v710 = vadd.f32 0.0, %v709
      %v711 = vpop.f32.mrb[0].mxu0
      %712 = vmatprep.mubr.f32.mxu0 0.0
      %713 = vmatmul.mubr.f32.gmra.mrb[0].mxu0 %v579
      %v714 = vpop.f32.mrb[0].mxu0
      %v715 = vadd.f32 0.0, %v714
      %v716 = vpop.f32.mrb[0].mxu0
      %717 = vmatprep.mubr.f32.mxu0 0.0
      %718 = vmatmul.mubr.f32.gmra.mrb[0].mxu0 %v582
      %v719 = vpop.f32.mrb[0].mxu0
      %v720 = vadd.f32 0.0, %v719
      %v721 = vpop.f32.mrb[0].mxu0
      %722 = vmatprep.mubr.f32.mxu0 0.0
      %723 = vmatmul.mubr.f32.gmra.mrb[0].mxu0 %v585
      %v724 = vpop.f32.mrb[0].mxu0
      %v725 = vadd.f32 0.0, %v724
      %v726 = vpop.f32.mrb[0].mxu0
      %727 = vmatprep.mubr.f32.mxu0 0.0
      %728 = vmatmul.mubr.f32.gmra.mrb[0].mxu0 %v588
      %v729 = vpop.f32.mrb[0].mxu0
      %v730 = vadd.f32 0.0, %v729
      %v731 = vpop.f32.mrb[0].mxu0
      %732 = vmatprep.mubr.f32.mxu0 0.0
      %733 = vmatmul.mubr.f32.gmra.mrb[0].mxu0 %v591
      %v734 = vpop.f32.mrb[0].mxu0
      %v735 = vadd.f32 0.0, %v734
      %v736 = vpop.f32.mrb[0].mxu0
      %737 = vdwg.mxu0
      %vm738 = vcmask 392192
      %v740 = vsel %vm738, %v404, 0
      %v743 = vsel %vm738, %v405, 0
      %v746 = vsel %vm738, %v406, 0
      %v749 = vsel %vm738, %v407, 0
      %v752 = vsel %vm738, %v408, 0
      %v755 = vsel %vm738, %v409, 0
      %v758 = vsel %vm738, %v410, 0
      %v761 = vsel %vm738, %v411, 0
      %v764 = vsel %vm738, %v412, 0
      %v767 = vsel %vm738, %v413, 0
      %v770 = vsel %vm738, %v414, 0
      %v773 = vsel %vm738, %v415, 0
      %v776 = vsel %vm738, %v416, 0
      %v779 = vsel %vm738, %v417, 0
      %v782 = vsel %vm738, %v418, 0
      %v785 = vsel %vm738, %v419, 0
      %787 = vmatprep.subr.mxu0 0.0
      %788 = vmatpush1.msra.mxu0 %v534
      %789 = vmatprep.subr.mxu0 0.0
      %790 = vmatpush1.msra.mxu0 %v535
      %791 = vmatprep.subr.mxu0 0.0
      %792 = vmatpush1.msra.mxu0 %v536
      %793 = vmatprep.subr.mxu0 0.0
      %794 = vmatpush1.msra.mxu0 %v537
      %795 = vmatprep.subr.mxu0 0.0
      %796 = vmatpush1.msra.mxu0 %v538
      %797 = vmatprep.subr.mxu0 0.0
      %798 = vmatpush1.msra.mxu0 %v539
      %799 = vmatprep.subr.mxu0 0.0
      %800 = vmatpush1.msra.mxu0 0.0
      %801 = vmatprep.subr.mxu0 0.0
      %802 = vmatpush1.msra.mxu0 0.0
      %803 = vmatprep.subr.mxu0 0.0
      %804 = vmatpush1.msra.mxu0 0.0
      %805 = vmatprep.subr.mxu0 0.0
      %806 = vmatpush1.msra.mxu0 0.0
      %807 = vmatprep.subr.mxu0 0.0
      %808 = vmatpush1.msra.mxu0 0.0
      %809 = vmatprep.subr.mxu0 0.0
      %810 = vmatpush1.msra.mxu0 0.0
      %811 = vmatprep.subr.mxu0 0.0
      %812 = vmatpush1.msra.mxu0 0.0
      %813 = vmatprep.subr.mxu0 0.0
      %814 = vmatpush1.msra.mxu0 0.0
      %815 = vmatprep.subr.mxu0 0.0
      %816 = vmatpush1.msra.mxu0 0.0
      %817 = vmatprep.subr.mxu0 0.0
      %818 = vmatpush1.msra.mxu0 0.0
      %819 = vmatprep.subr.mxu0 0.0
      %820 = vmatpush1.msra.mxu0 0.0
      %821 = vmatprep.subr.mxu0 0.0
      %822 = vmatpush1.msra.mxu0 0.0
      %823 = vmatprep.subr.mxu0 0.0
      %824 = vmatpush1.msra.mxu0 0.0
      %825 = vmatprep.subr.mxu0 0.0
      %826 = vmatpush1.msra.mxu0 0.0
      %827 = vmatprep.subr.mxu0 0.0
      %828 = vmatpush1.msra.mxu0 0.0
      %829 = vmatprep.subr.mxu0 0.0
      %830 = vmatpush1.msra.mxu0 0.0
      %831 = vmatprep.subr.mxu0 0.0
      %832 = vmatpush1.msra.mxu0 0.0
      %833 = vmatprep.subr.mxu0 0.0
      %834 = vmatpush1.msra.mxu0 0.0
      %835 = vmatprep.subr.mxu0 0.0
      %836 = vmatpush1.msra.mxu0 0.0
      %837 = vmatprep.subr.mxu0 0.0
      %838 = vmatpush1.msra.mxu0 0.0
      %839 = vmatprep.subr.mxu0 0.0
      %840 = vmatpush1.msra.mxu0 0.0
      %841 = vmatprep.subr.mxu0 0.0
      %842 = vmatpush1.msra.mxu0 0.0
      %843 = vmatprep.subr.mxu0 0.0
      %844 = vmatpush1.msra.mxu0 0.0
      %845 = vmatprep.subr.mxu0 0.0
      %846 = vmatpush1.msra.mxu0 0.0
      %847 = vmatprep.subr.mxu0 0.0
      %848 = vmatpush1.msra.mxu0 0.0
      %849 = vmatprep.subr.mxu0 0.0
      %850 = vmatpush1.msra.mxu0 0.0
      %851 = vmatprep.mubr.f32.mxu0 0.0
      %852 = vmatmul.mubr.f32.gmra.mrb[0].mxu0 %v740
      %v853 = vpop.f32.mrb[0].mxu0
      %v854 = vadd.f32 %v660, %v853
      %v855 = vpop.f32.mrb[0].mxu0
      %856 = vmatprep.mubr.f32.mxu0 0.0
      %857 = vmatmul.mubr.f32.gmra.mrb[0].mxu0 %v743
      %v858 = vpop.f32.mrb[0].mxu0
      %v859 = vadd.f32 %v665, %v858
      %v860 = vpop.f32.mrb[0].mxu0
      %861 = vmatprep.mubr.f32.mxu0 0.0
      %862 = vmatmul.mubr.f32.gmra.mrb[0].mxu0 %v746
      %v863 = vpop.f32.mrb[0].mxu0
      %v864 = vadd.f32 %v670, %v863
      %v865 = vpop.f32.mrb[0].mxu0
      %866 = vmatprep.mubr.f32.mxu0 0.0
      %867 = vmatmul.mubr.f32.gmra.mrb[0].mxu0 %v749
      %v868 = vpop.f32.mrb[0].mxu0
      %v869 = vadd.f32 %v675, %v868
      %v870 = vpop.f32.mrb[0].mxu0
      %871 = vmatprep.mubr.f32.mxu0 0.0
      %872 = vmatmul.mubr.f32.gmra.mrb[0].mxu0 %v752
      %v873 = vpop.f32.mrb[0].mxu0
      %v874 = vadd.f32 %v680, %v873
      %v875 = vpop.f32.mrb[0].mxu0
      %876 = vmatprep.mubr.f32.mxu0 0.0
      %877 = vmatmul.mubr.f32.gmra.mrb[0].mxu0 %v755
      %v878 = vpop.f32.mrb[0].mxu0
      %v879 = vadd.f32 %v685, %v878
      %v880 = vpop.f32.mrb[0].mxu0
      %881 = vmatprep.mubr.f32.mxu0 0.0
      %882 = vmatmul.mubr.f32.gmra.mrb[0].mxu0 %v758
      %v883 = vpop.f32.mrb[0].mxu0
      %v884 = vadd.f32 %v690, %v883
      %v885 = vpop.f32.mrb[0].mxu0
      %886 = vmatprep.mubr.f32.mxu0 0.0
      %887 = vmatmul.mubr.f32.gmra.mrb[0].mxu0 %v761
      %v888 = vpop.f32.mrb[0].mxu0
      %v889 = vadd.f32 %v695, %v888
      %v890 = vpop.f32.mrb[0].mxu0
      %891 = vmatprep.mubr.f32.mxu0 0.0
      %892 = vmatmul.mubr.f32.gmra.mrb[0].mxu0 %v764
      %v893 = vpop.f32.mrb[0].mxu0
      %v894 = vadd.f32 %v700, %v893
      %v895 = vpop.f32.mrb[0].mxu0
      %896 = vmatprep.mubr.f32.mxu0 0.0
      %897 = vmatmul.mubr.f32.gmra.mrb[0].mxu0 %v767
      %v898 = vpop.f32.mrb[0].mxu0
      %v899 = vadd.f32 %v705, %v898
      %v900 = vpop.f32.mrb[0].mxu0
      %901 = vmatprep.mubr.f32.mxu0 0.0
      %902 = vmatmul.mubr.f32.gmra.mrb[0].mxu0 %v770
      %v903 = vpop.f32.mrb[0].mxu0
      %v904 = vadd.f32 %v710, %v903
      %v905 = vpop.f32.mrb[0].mxu0
      %906 = vmatprep.mubr.f32.mxu0 0.0
      %907 = vmatmul.mubr.f32.gmra.mrb[0].mxu0 %v773
      %v908 = vpop.f32.mrb[0].mxu0
      %v909 = vadd.f32 %v715, %v908
      %v910 = vpop.f32.mrb[0].mxu0
      %911 = vmatprep.mubr.f32.mxu0 0.0
      %912 = vmatmul.mubr.f32.gmra.mrb[0].mxu0 %v776
      %v913 = vpop.f32.mrb[0].mxu0
      %v914 = vadd.f32 %v720, %v913
      %v915 = vpop.f32.mrb[0].mxu0
      %916 = vmatprep.mubr.f32.mxu0 0.0
      %917 = vmatmul.mubr.f32.gmra.mrb[0].mxu0 %v779
      %v918 = vpop.f32.mrb[0].mxu0
      %v919 = vadd.f32 %v725, %v918
      %v920 = vpop.f32.mrb[0].mxu0
      %921 = vmatprep.mubr.f32.mxu0 0.0
      %922 = vmatmul.mubr.f32.gmra.mrb[0].mxu0 %v782
      %v923 = vpop.f32.mrb[0].mxu0
      %v924 = vadd.f32 %v730, %v923
      %v925 = vpop.f32.mrb[0].mxu0
      %926 = vmatprep.mubr.f32.mxu0 0.0
      %927 = vmatmul.mubr.f32.gmra.mrb[0].mxu0 %v785
      %v928 = vpop.f32.mrb[0].mxu0
      %v929 = vadd.f32 %v735, %v928
      %v930 = vpop.f32.mrb[0].mxu0
      %931 = vdwg.mxu0
      %v932 = vld [vmem:[%s3] sm:$0x1]
      %v934 = vlaneseq
      %v935 = vshrl.u32 %v934, 7
      %v936 = vsub.s32 0, %v935
      %v937 = vrot.slane %v932, %v936
      %v939 = vadd.f32 %v854, %v937
      %v940 = vadd.f32 %v859, %v937
      %v941 = vadd.f32 %v864, %v937
      %v942 = vadd.f32 %v869, %v937
      %v943 = vadd.f32 %v874, %v937
      %v944 = vadd.f32 %v879, %v937
      %v945 = vadd.f32 %v884, %v937
      %v946 = vadd.f32 %v889, %v937
      %v947 = vadd.f32 %v894, %v937
      %v948 = vadd.f32 %v899, %v937
      %v949 = vadd.f32 %v904, %v937
      %v950 = vadd.f32 %v909, %v937
      %v951 = vadd.f32 %v914, %v937
      %v952 = vadd.f32 %v919, %v937
      %v953 = vadd.f32 %v924, %v937
      %v954 = vadd.f32 %v929, %v937
      %v955 = vmul.f32 %v939, 0.5
      %v956 = vmul.f32 %v940, 0.5
      %v957 = vmul.f32 %v941, 0.5
      %v958 = vmul.f32 %v942, 0.5
      %v959 = vmul.f32 %v943, 0.5
      %v960 = vmul.f32 %v944, 0.5
      %v961 = vmul.f32 %v945, 0.5
      %v962 = vmul.f32 %v946, 0.5
      %v963 = vmul.f32 %v947, 0.5
      %v964 = vmul.f32 %v948, 0.5
      %v965 = vmul.f32 %v949, 0.5
      %v966 = vmul.f32 %v950, 0.5
      %v967 = vmul.f32 %v951, 0.5
      %v968 = vmul.f32 %v952, 0.5
      %v969 = vmul.f32 %v953, 0.5
      %v970 = vmul.f32 %v954, 0.5
      %v971 = vmul.f32 %v939, 0.70710677
      %v972 = vmul.f32 %v940, 0.70710677
      %v973 = vmul.f32 %v941, 0.70710677
      %v974 = vmul.f32 %v942, 0.70710677
      %v975 = vmul.f32 %v943, 0.70710677
      %v976 = vmul.f32 %v944, 0.70710677
      %v977 = vmul.f32 %v945, 0.70710677
      %v978 = vmul.f32 %v946, 0.70710677
      %v979 = vmul.f32 %v947, 0.70710677
      %v980 = vmul.f32 %v948, 0.70710677
      %v981 = vmul.f32 %v949, 0.70710677
      %v982 = vmul.f32 %v950, 0.70710677
      %v983 = vmul.f32 %v951, 0.70710677
      %v984 = vmul.f32 %v952, 0.70710677
      %v985 = vmul.f32 %v953, 0.70710677
      %v986 = vmul.f32 %v954, 0.70710677
      %v987 = verf.f32.pop %v971
      %v988 = verf.f32.pop %v972
      %v989 = verf.f32.pop %v973
      %v990 = verf.f32.pop %v974
      %v991 = verf.f32.pop %v975
      %v992 = verf.f32.pop %v976
      %v993 = verf.f32.pop %v977
      %v994 = verf.f32.pop %v978
      %v995 = verf.f32.pop %v979
      %v996 = verf.f32.pop %v980
      %v997 = verf.f32.pop %v981
      %v998 = verf.f32.pop %v982
      %v999 = verf.f32.pop %v983
      %v1000 = verf.f32.pop %v984
      %v1001 = verf.f32.pop %v985
      %v1002 = verf.f32.pop %v986
      %v1003 = vadd.f32 %v987, 1.0
      %v1004 = vadd.f32 %v988, 1.0
      %v1005 = vadd.f32 %v989, 1.0
      %v1006 = vadd.f32 %v990, 1.0
      %v1007 = vadd.f32 %v991, 1.0
      %v1008 = vadd.f32 %v992, 1.0
      %v1009 = vadd.f32 %v993, 1.0
      %v1010 = vadd.f32 %v994, 1.0
      %v1011 = vadd.f32 %v995, 1.0
      %v1012 = vadd.f32 %v996, 1.0
      %v1013 = vadd.f32 %v997, 1.0
      %v1014 = vadd.f32 %v998, 1.0
      %v1015 = vadd.f32 %v999, 1.0
      %v1016 = vadd.f32 %v1000, 1.0
      %v1017 = vadd.f32 %v1001, 1.0
      %v1018 = vadd.f32 %v1002, 1.0
      %v1019 = vmul.f32 %v955, %v1003
      %v1020 = vmul.f32 %v956, %v1004
      %v1021 = vmul.f32 %v957, %v1005
      %v1022 = vmul.f32 %v958, %v1006
      %v1023 = vmul.f32 %v959, %v1007
      %v1024 = vmul.f32 %v960, %v1008
      %v1025 = vmul.f32 %v961, %v1009
      %v1026 = vmul.f32 %v962, %v1010
      %v1027 = vmul.f32 %v963, %v1011
      %v1028 = vmul.f32 %v964, %v1012
      %v1029 = vmul.f32 %v965, %v1013
      %v1030 = vmul.f32 %v966, %v1014
      %v1031 = vmul.f32 %v967, %v1015
      %v1032 = vmul.f32 %v968, %v1016
      %v1033 = vmul.f32 %v969, %v1017
      %v1034 = vmul.f32 %v970, %v1018
      %v1035 = vld [vmem:[%s4] sm:$0xff]
      %v1036 = vld [vmem:[%s4 + $0x8] sm:$0xff]
      %v1037 = vld [vmem:[%s4 + $0x10] sm:$0xff]
      %v1038 = vld [vmem:[%s4 + $0x18] sm:$0xff]
      %v1039 = vld [vmem:[%s4 + $0x20] sm:$0xff]
      %v1040 = vld [vmem:[%s5] sm:$0x1]
      %v1042 = vlaneseq
      %v1043 = vshrl.u32 %v1042, 7
      %v1044 = vsub.s32 0, %v1043
      %v1045 = vrot.slane %v1040, %v1044
      %vm1047 = vcmask 326656
      %v1049 = vsel %vm1047, %v1019, 0
      %v1052 = vsel %vm1047, %v1020, 0
      %v1055 = vsel %vm1047, %v1021, 0
      %v1058 = vsel %vm1047, %v1022, 0
      %v1061 = vsel %vm1047, %v1023, 0
      %v1064 = vsel %vm1047, %v1024, 0
      %v1067 = vsel %vm1047, %v1025, 0
      %v1070 = vsel %vm1047, %v1026, 0
      %v1073 = vsel %vm1047, %v1027, 0
      %v1076 = vsel %vm1047, %v1028, 0
      %v1079 = vsel %vm1047, %v1029, 0
      %v1082 = vsel %vm1047, %v1030, 0
      %v1085 = vsel %vm1047, %v1031, 0
      %v1088 = vsel %vm1047, %v1032, 0
      %v1091 = vsel %vm1047, %v1033, 0
      %v1094 = vsel %vm1047, %v1034, 0
      %1096 = vmatprep.subr.mxu0 0.0
      %1097 = vmatpush1.msra.mxu0 %v1035
      %1098 = vmatprep.subr.mxu0 0.0
      %1099 = vmatpush1.msra.mxu0 %v1036
      %1100 = vmatprep.subr.mxu0 0.0
      %1101 = vmatpush1.msra.mxu0 %v1037
      %1102 = vmatprep.subr.mxu0 0.0
      %1103 = vmatpush1.msra.mxu0 %v1038
      %1104 = vmatprep.subr.mxu0 0.0
      %1105 = vmatpush1.msra.mxu0 %v1039
      %1106 = vmatprep.subr.mxu0 0.0
      %1107 = vmatpush1.msra.mxu0 0.0
      %1108 = vmatprep.subr.mxu0 0.0
      %1109 = vmatpush1.msra.mxu0 0.0
      %1110 = vmatprep.subr.mxu0 0.0
      %1111 = vmatpush1.msra.mxu0 0.0
      %1112 = vmatprep.subr.mxu0 0.0
      %1113 = vmatpush1.msra.mxu0 0.0
      %1114 = vmatprep.subr.mxu0 0.0
      %1115 = vmatpush1.msra.mxu0 0.0
      %1116 = vmatprep.subr.mxu0 0.0
      %1117 = vmatpush1.msra.mxu0 0.0
      %1118 = vmatprep.subr.mxu0 0.0
      %1119 = vmatpush1.msra.mxu0 0.0
      %1120 = vmatprep.subr.mxu0 0.0
      %1121 = vmatpush1.msra.mxu0 0.0
      %1122 = vmatprep.subr.mxu0 0.0
      %1123 = vmatpush1.msra.mxu0 0.0
      %1124 = vmatprep.subr.mxu0 0.0
      %1125 = vmatpush1.msra.mxu0 0.0
      %1126 = vmatprep.subr.mxu0 0.0
      %1127 = vmatpush1.msra.mxu0 0.0
      %1128 = vmatprep.subr.mxu0 0.0
      %1129 = vmatpush1.msra.mxu0 0.0
      %1130 = vmatprep.subr.mxu0 0.0
      %1131 = vmatpush1.msra.mxu0 0.0
      %1132 = vmatprep.subr.mxu0 0.0
      %1133 = vmatpush1.msra.mxu0 0.0
      %1134 = vmatprep.subr.mxu0 0.0
      %1135 = vmatpush1.msra.mxu0 0.0
      %1136 = vmatprep.subr.mxu0 0.0
      %1137 = vmatpush1.msra.mxu0 0.0
      %1138 = vmatprep.subr.mxu0 0.0
      %1139 = vmatpush1.msra.mxu0 0.0
      %1140 = vmatprep.subr.mxu0 0.0
      %1141 = vmatpush1.msra.mxu0 0.0
      %1142 = vmatprep.subr.mxu0 0.0
      %1143 = vmatpush1.msra.mxu0 0.0
      %1144 = vmatprep.subr.mxu0 0.0
      %1145 = vmatpush1.msra.mxu0 0.0
      %1146 = vmatprep.subr.mxu0 0.0
      %1147 = vmatpush1.msra.mxu0 0.0
      %1148 = vmatprep.subr.mxu0 0.0
      %1149 = vmatpush1.msra.mxu0 0.0
      %1150 = vmatprep.subr.mxu0 0.0
      %1151 = vmatpush1.msra.mxu0 0.0
      %1152 = vmatprep.subr.mxu0 0.0
      %1153 = vmatpush1.msra.mxu0 0.0
      %1154 = vmatprep.subr.mxu0 0.0
      %1155 = vmatpush1.msra.mxu0 0.0
      %1156 = vmatprep.subr.mxu0 0.0
      %1157 = vmatpush1.msra.mxu0 0.0
      %1158 = vmatprep.subr.mxu0 0.0
      %1159 = vmatpush1.msra.mxu0 0.0
      %1160 = vmatprep.mubr.f32.mxu0 0.0
      %1161 = vmatmul.mubr.f32.gmra.mrb[0].mxu0 %v1049
      %v1162 = vpop.f32.mrb[0].mxu0
      %v1163 = vadd.f32 %v1045, %v1162
      %v1164 = vpop.f32.mrb[0].mxu0
      %1165 = vmatprep.mubr.f32.mxu0 0.0
      %1166 = vmatmul.mubr.f32.gmra.mrb[0].mxu0 %v1052
      %v1167 = vpop.f32.mrb[0].mxu0
      %v1168 = vadd.f32 %v1045, %v1167
      %v1169 = vpop.f32.mrb[0].mxu0
      %1170 = vmatprep.mubr.f32.mxu0 0.0
      %1171 = vmatmul.mubr.f32.gmra.mrb[0].mxu0 %v1055
      %v1172 = vpop.f32.mrb[0].mxu0
      %v1173 = vadd.f32 %v1045, %v1172
      %v1174 = vpop.f32.mrb[0].mxu0
      %1175 = vmatprep.mubr.f32.mxu0 0.0
      %1176 = vmatmul.mubr.f32.gmra.mrb[0].mxu0 %v1058
      %v1177 = vpop.f32.mrb[0].mxu0
      %v1178 = vadd.f32 %v1045, %v1177
      %v1179 = vpop.f32.mrb[0].mxu0
      %1180 = vmatprep.mubr.f32.mxu0 0.0
      %1181 = vmatmul.mubr.f32.gmra.mrb[0].mxu0 %v1061
      %v1182 = vpop.f32.mrb[0].mxu0
      %v1183 = vadd.f32 %v1045, %v1182
      %v1184 = vpop.f32.mrb[0].mxu0
      %1185 = vmatprep.mubr.f32.mxu0 0.0
      %1186 = vmatmul.mubr.f32.gmra.mrb[0].mxu0 %v1064
      %v1187 = vpop.f32.mrb[0].mxu0
      %v1188 = vadd.f32 %v1045, %v1187
      %v1189 = vpop.f32.mrb[0].mxu0
      %1190 = vmatprep.mubr.f32.mxu0 0.0
      %1191 = vmatmul.mubr.f32.gmra.mrb[0].mxu0 %v1067
      %v1192 = vpop.f32.mrb[0].mxu0
      %v1193 = vadd.f32 %v1045, %v1192
      %v1194 = vpop.f32.mrb[0].mxu0
      %1195 = vmatprep.mubr.f32.mxu0 0.0
      %1196 = vmatmul.mubr.f32.gmra.mrb[0].mxu0 %v1070
      %v1197 = vpop.f32.mrb[0].mxu0
      %v1198 = vadd.f32 %v1045, %v1197
      %v1199 = vpop.f32.mrb[0].mxu0
      %1200 = vmatprep.mubr.f32.mxu0 0.0
      %1201 = vmatmul.mubr.f32.gmra.mrb[0].mxu0 %v1073
      %v1202 = vpop.f32.mrb[0].mxu0
      %v1203 = vadd.f32 %v1045, %v1202
      %v1204 = vpop.f32.mrb[0].mxu0
      %1205 = vmatprep.mubr.f32.mxu0 0.0
      %1206 = vmatmul.mubr.f32.gmra.mrb[0].mxu0 %v1076
      %v1207 = vpop.f32.mrb[0].mxu0
      %v1208 = vadd.f32 %v1045, %v1207
      %v1209 = vpop.f32.mrb[0].mxu0
      %1210 = vmatprep.mubr.f32.mxu0 0.0
      %1211 = vmatmul.mubr.f32.gmra.mrb[0].mxu0 %v1079
      %v1212 = vpop.f32.mrb[0].mxu0
      %v1213 = vadd.f32 %v1045, %v1212
      %v1214 = vpop.f32.mrb[0].mxu0
      %1215 = vmatprep.mubr.f32.mxu0 0.0
      %1216 = vmatmul.mubr.f32.gmra.mrb[0].mxu0 %v1082
      %v1217 = vpop.f32.mrb[0].mxu0
      %v1218 = vadd.f32 %v1045, %v1217
      %v1219 = vpop.f32.mrb[0].mxu0
      %1220 = vmatprep.mubr.f32.mxu0 0.0
      %1221 = vmatmul.mubr.f32.gmra.mrb[0].mxu0 %v1085
      %v1222 = vpop.f32.mrb[0].mxu0
      %v1223 = vadd.f32 %v1045, %v1222
      %v1224 = vpop.f32.mrb[0].mxu0
      %1225 = vmatprep.mubr.f32.mxu0 0.0
      %1226 = vmatmul.mubr.f32.gmra.mrb[0].mxu0 %v1088
      %v1227 = vpop.f32.mrb[0].mxu0
      %v1228 = vadd.f32 %v1045, %v1227
      %v1229 = vpop.f32.mrb[0].mxu0
      %1230 = vmatprep.mubr.f32.mxu0 0.0
      %1231 = vmatmul.mubr.f32.gmra.mrb[0].mxu0 %v1091
      %v1232 = vpop.f32.mrb[0].mxu0
      %v1233 = vadd.f32 %v1045, %v1232
      %v1234 = vpop.f32.mrb[0].mxu0
      %1235 = vmatprep.mubr.f32.mxu0 0.0
      %1236 = vmatmul.mubr.f32.gmra.mrb[0].mxu0 %v1094
      %v1237 = vpop.f32.mrb[0].mxu0
      %v1238 = vadd.f32 %v1045, %v1237
      %v1239 = vpop.f32.mrb[0].mxu0
      %1240 = vdwg.mxu0
      %v1241 = vld [vmem:[%s6] sm:$0xff]
      %v1242 = vld [vmem:[%s6 + $0x8] sm:$0xff]
      %v1243 = vld [vmem:[%s7] sm:$0x1]
      %v1245 = vlaneseq
      %v1246 = vshrl.u32 %v1245, 7
      %v1247 = vsub.s32 0, %v1246
      %v1248 = vrot.slane %v1243, %v1247
      %vm1250 = vcmask 130048
      %v1252 = vsel %vm1250, %v1163, 0
      %v1255 = vsel %vm1250, %v1168, 0
      %v1258 = vsel %vm1250, %v1173, 0
      %v1261 = vsel %vm1250, %v1178, 0
      %v1264 = vsel %vm1250, %v1183, 0
      %v1267 = vsel %vm1250, %v1188, 0
      %v1270 = vsel %vm1250, %v1193, 0
      %v1273 = vsel %vm1250, %v1198, 0
      %v1276 = vsel %vm1250, %v1203, 0
      %v1279 = vsel %vm1250, %v1208, 0
      %v1282 = vsel %vm1250, %v1213, 0
      %v1285 = vsel %vm1250, %v1218, 0
      %v1288 = vsel %vm1250, %v1223, 0
      %v1291 = vsel %vm1250, %v1228, 0
      %v1294 = vsel %vm1250, %v1233, 0
      %v1297 = vsel %vm1250, %v1238, 0
      %1299 = vmatprep.subr.mxu0 0.0
      %1300 = vmatpush1.msra.mxu0 %v1241
      %1301 = vmatprep.subr.mxu0 0.0
      %1302 = vmatpush1.msra.mxu0 %v1242
      %1303 = vmatprep.subr.mxu0 0.0
      %1304 = vmatpush1.msra.mxu0 0.0
      %1305 = vmatprep.subr.mxu0 0.0
      %1306 = vmatpush1.msra.mxu0 0.0
      %1307 = vmatprep.subr.mxu0 0.0
      %1308 = vmatpush1.msra.mxu0 0.0
      %1309 = vmatprep.subr.mxu0 0.0
      %1310 = vmatpush1.msra.mxu0 0.0
      %1311 = vmatprep.subr.mxu0 0.0
      %1312 = vmatpush1.msra.mxu0 0.0
      %1313 = vmatprep.subr.mxu0 0.0
      %1314 = vmatpush1.msra.mxu0 0.0
      %1315 = vmatprep.subr.mxu0 0.0
      %1316 = vmatpush1.msra.mxu0 0.0
      %1317 = vmatprep.subr.mxu0 0.0
      %1318 = vmatpush1.msra.mxu0 0.0
      %1319 = vmatprep.subr.mxu0 0.0
      %1320 = vmatpush1.msra.mxu0 0.0
      %1321 = vmatprep.subr.mxu0 0.0
      %1322 = vmatpush1.msra.mxu0 0.0
      %1323 = vmatprep.subr.mxu0 0.0
      %1324 = vmatpush1.msra.mxu0 0.0
      %1325 = vmatprep.subr.mxu0 0.0
      %1326 = vmatpush1.msra.mxu0 0.0
      %1327 = vmatprep.subr.mxu0 0.0
      %1328 = vmatpush1.msra.mxu0 0.0
      %1329 = vmatprep.subr.mxu0 0.0
      %1330 = vmatpush1.msra.mxu0 0.0
      %1331 = vmatprep.subr.mxu0 0.0
      %1332 = vmatpush1.msra.mxu0 0.0
      %1333 = vmatprep.subr.mxu0 0.0
      %1334 = vmatpush1.msra.mxu0 0.0
      %1335 = vmatprep.subr.mxu0 0.0
      %1336 = vmatpush1.msra.mxu0 0.0
      %1337 = vmatprep.subr.mxu0 0.0
      %1338 = vmatpush1.msra.mxu0 0.0
      %1339 = vmatprep.subr.mxu0 0.0
      %1340 = vmatpush1.msra.mxu0 0.0
      %1341 = vmatprep.subr.mxu0 0.0
      %1342 = vmatpush1.msra.mxu0 0.0
      %1343 = vmatprep.subr.mxu0 0.0
      %1344 = vmatpush1.msra.mxu0 0.0
      %1345 = vmatprep.subr.mxu0 0.0
      %1346 = vmatpush1.msra.mxu0 0.0
      %1347 = vmatprep.subr.mxu0 0.0
      %1348 = vmatpush1.msra.mxu0 0.0
      %1349 = vmatprep.subr.mxu0 0.0
      %1350 = vmatpush1.msra.mxu0 0.0
      %1351 = vmatprep.subr.mxu0 0.0
      %1352 = vmatpush1.msra.mxu0 0.0
      %1353 = vmatprep.subr.mxu0 0.0
      %1354 = vmatpush1.msra.mxu0 0.0
      %1355 = vmatprep.subr.mxu0 0.0
      %1356 = vmatpush1.msra.mxu0 0.0
      %1357 = vmatprep.subr.mxu0 0.0
      %1358 = vmatpush1.msra.mxu0 0.0
      %1359 = vmatprep.subr.mxu0 0.0
      %1360 = vmatpush1.msra.mxu0 0.0
      %1361 = vmatprep.subr.mxu0 0.0
      %1362 = vmatpush1.msra.mxu0 0.0
      %1363 = vmatprep.mubr.f32.mxu0 0.0
      %1364 = vmatmul.mubr.f32.gmra.mrb[0].mxu0 %v1252
      %v1365 = vpop.f32.mrb[0].mxu0
      %v1366 = vadd.f32 %v1248, %v1365
      %v1367 = vpop.f32.mrb[0].mxu0
      %1368 = vmatprep.mubr.f32.mxu0 0.0
      %1369 = vmatmul.mubr.f32.gmra.mrb[0].mxu0 %v1255
      %v1370 = vpop.f32.mrb[0].mxu0
      %v1371 = vadd.f32 %v1248, %v1370
      %v1372 = vpop.f32.mrb[0].mxu0
      %1373 = vmatprep.mubr.f32.mxu0 0.0
      %1374 = vmatmul.mubr.f32.gmra.mrb[0].mxu0 %v1258
      %v1375 = vpop.f32.mrb[0].mxu0
      %v1376 = vadd.f32 %v1248, %v1375
      %v1377 = vpop.f32.mrb[0].mxu0
      %1378 = vmatprep.mubr.f32.mxu0 0.0
      %1379 = vmatmul.mubr.f32.gmra.mrb[0].mxu0 %v1261
      %v1380 = vpop.f32.mrb[0].mxu0
      %v1381 = vadd.f32 %v1248, %v1380
      %v1382 = vpop.f32.mrb[0].mxu0
      %1383 = vmatprep.mubr.f32.mxu0 0.0
      %1384 = vmatmul.mubr.f32.gmra.mrb[0].mxu0 %v1264
      %v1385 = vpop.f32.mrb[0].mxu0
      %v1386 = vadd.f32 %v1248, %v1385
      %v1387 = vpop.f32.mrb[0].mxu0
      %1388 = vmatprep.mubr.f32.mxu0 0.0
      %1389 = vmatmul.mubr.f32.gmra.mrb[0].mxu0 %v1267
      %v1390 = vpop.f32.mrb[0].mxu0
      %v1391 = vadd.f32 %v1248, %v1390
      %v1392 = vpop.f32.mrb[0].mxu0
      %1393 = vmatprep.mubr.f32.mxu0 0.0
      %1394 = vmatmul.mubr.f32.gmra.mrb[0].mxu0 %v1270
      %v1395 = vpop.f32.mrb[0].mxu0
      %v1396 = vadd.f32 %v1248, %v1395
      %v1397 = vpop.f32.mrb[0].mxu0
      %1398 = vmatprep.mubr.f32.mxu0 0.0
      %1399 = vmatmul.mubr.f32.gmra.mrb[0].mxu0 %v1273
      %v1400 = vpop.f32.mrb[0].mxu0
      %v1401 = vadd.f32 %v1248, %v1400
      %v1402 = vpop.f32.mrb[0].mxu0
      %1403 = vmatprep.mubr.f32.mxu0 0.0
      %1404 = vmatmul.mubr.f32.gmra.mrb[0].mxu0 %v1276
      %v1405 = vpop.f32.mrb[0].mxu0
      %v1406 = vadd.f32 %v1248, %v1405
      %v1407 = vpop.f32.mrb[0].mxu0
      %1408 = vmatprep.mubr.f32.mxu0 0.0
      %1409 = vmatmul.mubr.f32.gmra.mrb[0].mxu0 %v1279
      %v1410 = vpop.f32.mrb[0].mxu0
      %v1411 = vadd.f32 %v1248, %v1410
      %v1412 = vpop.f32.mrb[0].mxu0
      %1413 = vmatprep.mubr.f32.mxu0 0.0
      %1414 = vmatmul.mubr.f32.gmra.mrb[0].mxu0 %v1282
      %v1415 = vpop.f32.mrb[0].mxu0
      %v1416 = vadd.f32 %v1248, %v1415
      %v1417 = vpop.f32.mrb[0].mxu0
      %1418 = vmatprep.mubr.f32.mxu0 0.0
      %1419 = vmatmul.mubr.f32.gmra.mrb[0].mxu0 %v1285
      %v1420 = vpop.f32.mrb[0].mxu0
      %v1421 = vadd.f32 %v1248, %v1420
      %v1422 = vpop.f32.mrb[0].mxu0
      %1423 = vmatprep.mubr.f32.mxu0 0.0
      %1424 = vmatmul.mubr.f32.gmra.mrb[0].mxu0 %v1288
      %v1425 = vpop.f32.mrb[0].mxu0
      %v1426 = vadd.f32 %v1248, %v1425
      %v1427 = vpop.f32.mrb[0].mxu0
      %1428 = vmatprep.mubr.f32.mxu0 0.0
      %1429 = vmatmul.mubr.f32.gmra.mrb[0].mxu0 %v1291
      %v1430 = vpop.f32.mrb[0].mxu0
      %v1431 = vadd.f32 %v1248, %v1430
      %v1432 = vpop.f32.mrb[0].mxu0
      %1433 = vmatprep.mubr.f32.mxu0 0.0
      %1434 = vmatmul.mubr.f32.gmra.mrb[0].mxu0 %v1294
      %v1435 = vpop.f32.mrb[0].mxu0
      %v1436 = vadd.f32 %v1248, %v1435
      %v1437 = vpop.f32.mrb[0].mxu0
      %1438 = vmatprep.mubr.f32.mxu0 0.0
      %1439 = vmatmul.mubr.f32.gmra.mrb[0].mxu0 %v1297
      %v1440 = vpop.f32.mrb[0].mxu0
      %v1441 = vadd.f32 %v1248, %v1440
      %v1442 = vpop.f32.mrb[0].mxu0
      %1443 = vdwg.mxu0
      %v1444 = vmul.f32 %v1366, 0.5
      %v1445 = vmul.f32 %v1371, 0.5
      %v1446 = vmul.f32 %v1376, 0.5
      %v1447 = vmul.f32 %v1381, 0.5
      %v1448 = vmul.f32 %v1386, 0.5
      %v1449 = vmul.f32 %v1391, 0.5
      %v1450 = vmul.f32 %v1396, 0.5
      %v1451 = vmul.f32 %v1401, 0.5
      %v1452 = vmul.f32 %v1406, 0.5
      %v1453 = vmul.f32 %v1411, 0.5
      %v1454 = vmul.f32 %v1416, 0.5
      %v1455 = vmul.f32 %v1421, 0.5
      %v1456 = vmul.f32 %v1426, 0.5
      %v1457 = vmul.f32 %v1431, 0.5
      %v1458 = vmul.f32 %v1436, 0.5
      %v1459 = vmul.f32 %v1441, 0.5
      %v1460 = vmul.f32 %v1366, 0.70710677
      %v1461 = vmul.f32 %v1371, 0.70710677
      %v1462 = vmul.f32 %v1376, 0.70710677
      %v1463 = vmul.f32 %v1381, 0.70710677
      %v1464 = vmul.f32 %v1386, 0.70710677
      %v1465 = vmul.f32 %v1391, 0.70710677
      %v1466 = vmul.f32 %v1396, 0.70710677
      %v1467 = vmul.f32 %v1401, 0.70710677
      %v1468 = vmul.f32 %v1406, 0.70710677
      %v1469 = vmul.f32 %v1411, 0.70710677
      %v1470 = vmul.f32 %v1416, 0.70710677
      %v1471 = vmul.f32 %v1421, 0.70710677
      %v1472 = vmul.f32 %v1426, 0.70710677
      %v1473 = vmul.f32 %v1431, 0.70710677
      %v1474 = vmul.f32 %v1436, 0.70710677
      %v1475 = vmul.f32 %v1441, 0.70710677
      %v1476 = verf.f32.pop %v1460
      %v1477 = verf.f32.pop %v1461
      %v1478 = verf.f32.pop %v1462
      %v1479 = verf.f32.pop %v1463
      %v1480 = verf.f32.pop %v1464
      %v1481 = verf.f32.pop %v1465
      %v1482 = verf.f32.pop %v1466
      %v1483 = verf.f32.pop %v1467
      %v1484 = verf.f32.pop %v1468
      %v1485 = verf.f32.pop %v1469
      %v1486 = verf.f32.pop %v1470
      %v1487 = verf.f32.pop %v1471
      %v1488 = verf.f32.pop %v1472
      %v1489 = verf.f32.pop %v1473
      %v1490 = verf.f32.pop %v1474
      %v1491 = verf.f32.pop %v1475
      %v1492 = vadd.f32 %v1476, 1.0
      %v1493 = vadd.f32 %v1477, 1.0
      %v1494 = vadd.f32 %v1478, 1.0
      %v1495 = vadd.f32 %v1479, 1.0
      %v1496 = vadd.f32 %v1480, 1.0
      %v1497 = vadd.f32 %v1481, 1.0
      %v1498 = vadd.f32 %v1482, 1.0
      %v1499 = vadd.f32 %v1483, 1.0
      %v1500 = vadd.f32 %v1484, 1.0
      %v1501 = vadd.f32 %v1485, 1.0
      %v1502 = vadd.f32 %v1486, 1.0
      %v1503 = vadd.f32 %v1487, 1.0
      %v1504 = vadd.f32 %v1488, 1.0
      %v1505 = vadd.f32 %v1489, 1.0
      %v1506 = vadd.f32 %v1490, 1.0
      %v1507 = vadd.f32 %v1491, 1.0
      %v1508 = vmul.f32 %v1444, %v1492
      %v1509 = vmul.f32 %v1445, %v1493
      %v1510 = vmul.f32 %v1446, %v1494
      %v1511 = vmul.f32 %v1447, %v1495
      %v1512 = vmul.f32 %v1448, %v1496
      %v1513 = vmul.f32 %v1449, %v1497
      %v1514 = vmul.f32 %v1450, %v1498
      %v1515 = vmul.f32 %v1451, %v1499
      %v1516 = vmul.f32 %v1452, %v1500
      %v1517 = vmul.f32 %v1453, %v1501
      %v1518 = vmul.f32 %v1454, %v1502
      %v1519 = vmul.f32 %v1455, %v1503
      %v1520 = vmul.f32 %v1456, %v1504
      %v1521 = vmul.f32 %v1457, %v1505
      %v1522 = vmul.f32 %v1458, %v1506
      %v1523 = vmul.f32 %v1459, %v1507
      %v1524 = vld [vmem:[%s8] sm:$0xff]
      %v1525 = vld [vmem:[%s8 + $0x8] sm:$0xff]
      %v1526 = vld [vmem:[%s8 + $0x10] sm:$0xff]
      %v1527 = vld [vmem:[%s8 + $0x18] sm:$0xff]
      %v1528 = vld [vmem:[%s9] sm:$0x1]
      %v1530 = vlaneseq
      %v1531 = vshrl.u32 %v1530, 7
      %v1532 = vsub.s32 0, %v1531
      %v1533 = vrot.slane %v1528, %v1532
      %v1536 = vsel %vm544, %v1508, 0
      %v1539 = vsel %vm544, %v1509, 0
      %v1542 = vsel %vm544, %v1510, 0
      %v1545 = vsel %vm544, %v1511, 0
      %v1548 = vsel %vm544, %v1512, 0
      %v1551 = vsel %vm544, %v1513, 0
      %v1554 = vsel %vm544, %v1514, 0
      %v1557 = vsel %vm544, %v1515, 0
      %v1560 = vsel %vm544, %v1516, 0
      %v1563 = vsel %vm544, %v1517, 0
      %v1566 = vsel %vm544, %v1518, 0
      %v1569 = vsel %vm544, %v1519, 0
      %v1572 = vsel %vm544, %v1520, 0
      %v1575 = vsel %vm544, %v1521, 0
      %v1578 = vsel %vm544, %v1522, 0
      %v1581 = vsel %vm544, %v1523, 0
      %1583 = vmatprep.subr.mxu0 0.0
      %1584 = vmatpush1.msra.mxu0 %v1524
      %1585 = vmatprep.subr.mxu0 0.0
      %1586 = vmatpush1.msra.mxu0 %v1525
      %1587 = vmatprep.subr.mxu0 0.0
      %1588 = vmatpush1.msra.mxu0 %v1526
      %1589 = vmatprep.subr.mxu0 0.0
      %1590 = vmatpush1.msra.mxu0 %v1527
      %1591 = vmatprep.subr.mxu0 0.0
      %1592 = vmatpush1.msra.mxu0 0.0
      %1593 = vmatprep.subr.mxu0 0.0
      %1594 = vmatpush1.msra.mxu0 0.0
      %1595 = vmatprep.subr.mxu0 0.0
      %1596 = vmatpush1.msra.mxu0 0.0
      %1597 = vmatprep.subr.mxu0 0.0
      %1598 = vmatpush1.msra.mxu0 0.0
      %1599 = vmatprep.subr.mxu0 0.0
      %1600 = vmatpush1.msra.mxu0 0.0
      %1601 = vmatprep.subr.mxu0 0.0
      %1602 = vmatpush1.msra.mxu0 0.0
      %1603 = vmatprep.subr.mxu0 0.0
      %1604 = vmatpush1.msra.mxu0 0.0
      %1605 = vmatprep.subr.mxu0 0.0
      %1606 = vmatpush1.msra.mxu0 0.0
      %1607 = vmatprep.subr.mxu0 0.0
      %1608 = vmatpush1.msra.mxu0 0.0
      %1609 = vmatprep.subr.mxu0 0.0
      %1610 = vmatpush1.msra.mxu0 0.0
      %1611 = vmatprep.subr.mxu0 0.0
      %1612 = vmatpush1.msra.mxu0 0.0
      %1613 = vmatprep.subr.mxu0 0.0
      %1614 = vmatpush1.msra.mxu0 0.0
      %1615 = vmatprep.subr.mxu0 0.0
      %1616 = vmatpush1.msra.mxu0 0.0
      %1617 = vmatprep.subr.mxu0 0.0
      %1618 = vmatpush1.msra.mxu0 0.0
      %1619 = vmatprep.subr.mxu0 0.0
      %1620 = vmatpush1.msra.mxu0 0.0
      %1621 = vmatprep.subr.mxu0 0.0
      %1622 = vmatpush1.msra.mxu0 0.0
      %1623 = vmatprep.subr.mxu0 0.0
      %1624 = vmatpush1.msra.mxu0 0.0
      %1625 = vmatprep.subr.mxu0 0.0
      %1626 = vmatpush1.msra.mxu0 0.0
      %1627 = vmatprep.subr.mxu0 0.0
      %1628 = vmatpush1.msra.mxu0 0.0
      %1629 = vmatprep.subr.mxu0 0.0
      %1630 = vmatpush1.msra.mxu0 0.0
      %1631 = vmatprep.subr.mxu0 0.0
      %1632 = vmatpush1.msra.mxu0 0.0
      %1633 = vmatprep.subr.mxu0 0.0
      %1634 = vmatpush1.msra.mxu0 0.0
      %1635 = vmatprep.subr.mxu0 0.0
      %1636 = vmatpush1.msra.mxu0 0.0
      %1637 = vmatprep.subr.mxu0 0.0
      %1638 = vmatpush1.msra.mxu0 0.0
      %1639 = vmatprep.subr.mxu0 0.0
      %1640 = vmatpush1.msra.mxu0 0.0
      %1641 = vmatprep.subr.mxu0 0.0
      %1642 = vmatpush1.msra.mxu0 0.0
      %1643 = vmatprep.subr.mxu0 0.0
      %1644 = vmatpush1.msra.mxu0 0.0
      %1645 = vmatprep.subr.mxu0 0.0
      %1646 = vmatpush1.msra.mxu0 0.0
      %1647 = vmatprep.mubr.f32.mxu0 0.0
      %1648 = vmatmul.mubr.f32.gmra.mrb[0].mxu0 %v1536
      %v1649 = vpop.f32.mrb[0].mxu0
      %v1650 = vadd.f32 %v1533, %v1649
      %v1651 = vpop.f32.mrb[0].mxu0
      %1652 = vmatprep.mubr.f32.mxu0 0.0
      %1653 = vmatmul.mubr.f32.gmra.mrb[0].mxu0 %v1539
      %v1654 = vpop.f32.mrb[0].mxu0
      %v1655 = vadd.f32 %v1533, %v1654
      %v1656 = vpop.f32.mrb[0].mxu0
      %1657 = vmatprep.mubr.f32.mxu0 0.0
      %1658 = vmatmul.mubr.f32.gmra.mrb[0].mxu0 %v1542
      %v1659 = vpop.f32.mrb[0].mxu0
      %v1660 = vadd.f32 %v1533, %v1659
      %v1661 = vpop.f32.mrb[0].mxu0
      %1662 = vmatprep.mubr.f32.mxu0 0.0
      %1663 = vmatmul.mubr.f32.gmra.mrb[0].mxu0 %v1545
      %v1664 = vpop.f32.mrb[0].mxu0
      %v1665 = vadd.f32 %v1533, %v1664
      %v1666 = vpop.f32.mrb[0].mxu0
      %1667 = vmatprep.mubr.f32.mxu0 0.0
      %1668 = vmatmul.mubr.f32.gmra.mrb[0].mxu0 %v1548
      %v1669 = vpop.f32.mrb[0].mxu0
      %v1670 = vadd.f32 %v1533, %v1669
      %v1671 = vpop.f32.mrb[0].mxu0
      %1672 = vmatprep.mubr.f32.mxu0 0.0
      %1673 = vmatmul.mubr.f32.gmra.mrb[0].mxu0 %v1551
      %v1674 = vpop.f32.mrb[0].mxu0
      %v1675 = vadd.f32 %v1533, %v1674
      %v1676 = vpop.f32.mrb[0].mxu0
      %1677 = vmatprep.mubr.f32.mxu0 0.0
      %1678 = vmatmul.mubr.f32.gmra.mrb[0].mxu0 %v1554
      %v1679 = vpop.f32.mrb[0].mxu0
      %v1680 = vadd.f32 %v1533, %v1679
      %v1681 = vpop.f32.mrb[0].mxu0
      %1682 = vmatprep.mubr.f32.mxu0 0.0
      %1683 = vmatmul.mubr.f32.gmra.mrb[0].mxu0 %v1557
      %v1684 = vpop.f32.mrb[0].mxu0
      %v1685 = vadd.f32 %v1533, %v1684
      %v1686 = vpop.f32.mrb[0].mxu0
      %1687 = vmatprep.mubr.f32.mxu0 0.0
      %1688 = vmatmul.mubr.f32.gmra.mrb[0].mxu0 %v1560
      %v1689 = vpop.f32.mrb[0].mxu0
      %v1690 = vadd.f32 %v1533, %v1689
      %v1691 = vpop.f32.mrb[0].mxu0
      %1692 = vmatprep.mubr.f32.mxu0 0.0
      %1693 = vmatmul.mubr.f32.gmra.mrb[0].mxu0 %v1563
      %v1694 = vpop.f32.mrb[0].mxu0
      %v1695 = vadd.f32 %v1533, %v1694
      %v1696 = vpop.f32.mrb[0].mxu0
      %1697 = vmatprep.mubr.f32.mxu0 0.0
      %1698 = vmatmul.mubr.f32.gmra.mrb[0].mxu0 %v1566
      %v1699 = vpop.f32.mrb[0].mxu0
      %v1700 = vadd.f32 %v1533, %v1699
      %v1701 = vpop.f32.mrb[0].mxu0
      %1702 = vmatprep.mubr.f32.mxu0 0.0
      %1703 = vmatmul.mubr.f32.gmra.mrb[0].mxu0 %v1569
      %v1704 = vpop.f32.mrb[0].mxu0
      %v1705 = vadd.f32 %v1533, %v1704
      %v1706 = vpop.f32.mrb[0].mxu0
      %1707 = vmatprep.mubr.f32.mxu0 0.0
      %1708 = vmatmul.mubr.f32.gmra.mrb[0].mxu0 %v1572
      %v1709 = vpop.f32.mrb[0].mxu0
      %v1710 = vadd.f32 %v1533, %v1709
      %v1711 = vpop.f32.mrb[0].mxu0
      %1712 = vmatprep.mubr.f32.mxu0 0.0
      %1713 = vmatmul.mubr.f32.gmra.mrb[0].mxu0 %v1575
      %v1714 = vpop.f32.mrb[0].mxu0
      %v1715 = vadd.f32 %v1533, %v1714
      %v1716 = vpop.f32.mrb[0].mxu0
      %1717 = vmatprep.mubr.f32.mxu0 0.0
      %1718 = vmatmul.mubr.f32.gmra.mrb[0].mxu0 %v1578
      %v1719 = vpop.f32.mrb[0].mxu0
      %v1720 = vadd.f32 %v1533, %v1719
      %v1721 = vpop.f32.mrb[0].mxu0
      %1722 = vmatprep.mubr.f32.mxu0 0.0
      %1723 = vmatmul.mubr.f32.gmra.mrb[0].mxu0 %v1581
      %v1724 = vpop.f32.mrb[0].mxu0
      %v1725 = vadd.f32 %v1533, %v1724
      %v1726 = vpop.f32.mrb[0].mxu0
      %1727 = vdwg.mxu0
      %1728 = vst.msk [vmem:[%s396] sm:$0xff] %vm738, %v1650
      %1729 = vst.msk [vmem:[%s396 + $0x8] sm:$0xff] %vm738, %v1655
      %1730 = vst.msk [vmem:[%s396 + $0x10] sm:$0xff] %vm738, %v1660
      %1731 = vst.msk [vmem:[%s396 + $0x18] sm:$0xff] %vm738, %v1665
      %1732 = vst.msk [vmem:[%s396 + $0x20] sm:$0xff] %vm738, %v1670
      %1733 = vst.msk [vmem:[%s396 + $0x28] sm:$0xff] %vm738, %v1675
      %1734 = vst.msk [vmem:[%s396 + $0x30] sm:$0xff] %vm738, %v1680
      %1735 = vst.msk [vmem:[%s396 + $0x38] sm:$0xff] %vm738, %v1685
      %1736 = vst.msk [vmem:[%s396 + $0x40] sm:$0xff] %vm738, %v1690
      %1737 = vst.msk [vmem:[%s396 + $0x48] sm:$0xff] %vm738, %v1695
      %1738 = vst.msk [vmem:[%s396 + $0x50] sm:$0xff] %vm738, %v1700
      %1739 = vst.msk [vmem:[%s396 + $0x58] sm:$0xff] %vm738, %v1705
      %1740 = vst.msk [vmem:[%s396 + $0x60] sm:$0xff] %vm738, %v1710
      %1741 = vst.msk [vmem:[%s396 + $0x68] sm:$0xff] %vm738, %v1715
      %1742 = vst.msk [vmem:[%s396 + $0x70] sm:$0xff] %vm738, %v1720
      %1743 = vst.msk [vmem:[%s396 + $0x78] sm:$0xff] %vm738, %v1725
      %1744 = vst.msk [vmem:[%s402] sm:$0xff] %vm1250, %v1163
      %1745 = vst.msk [vmem:[%s402 + $0x8] sm:$0xff] %vm1250, %v1168
      %1746 = vst.msk [vmem:[%s402 + $0x10] sm:$0xff] %vm1250, %v1173
      %1747 = vst.msk [vmem:[%s402 + $0x18] sm:$0xff] %vm1250, %v1178
      %1748 = vst.msk [vmem:[%s402 + $0x20] sm:$0xff] %vm1250, %v1183
      %1749 = vst.msk [vmem:[%s402 + $0x28] sm:$0xff] %vm1250, %v1188
      %1750 = vst.msk [vmem:[%s402 + $0x30] sm:$0xff] %vm1250, %v1193
      %1751 = vst.msk [vmem:[%s402 + $0x38] sm:$0xff] %vm1250, %v1198
      %1752 = vst.msk [vmem:[%s402 + $0x40] sm:$0xff] %vm1250, %v1203
      %1753 = vst.msk [vmem:[%s402 + $0x48] sm:$0xff] %vm1250, %v1208
      %1754 = vst.msk [vmem:[%s402 + $0x50] sm:$0xff] %vm1250, %v1213
      %1755 = vst.msk [vmem:[%s402 + $0x58] sm:$0xff] %vm1250, %v1218
      %1756 = vst.msk [vmem:[%s402 + $0x60] sm:$0xff] %vm1250, %v1223
      %1757 = vst.msk [vmem:[%s402 + $0x68] sm:$0xff] %vm1250, %v1228
      %1758 = vst.msk [vmem:[%s402 + $0x70] sm:$0xff] %vm1250, %v1233
      %1759 = vst.msk [vmem:[%s402 + $0x78] sm:$0xff] %vm1250, %v1238
      %s1760 = smul.u32 16, %s23
      %p1761 = scmp.lt.s32.totalorder %s1760, 47
      %s1762 = scalar_select %p1761, %s1760, 47
      %s1763 = smul.addr %s1762, 8
      %s1764 = scalar_lea.vmem %s10, %s1763
      %s1765 = smul.u32 16, %s23
      %p1766 = scmp.lt.s32.totalorder %s1765, 47
      %s1767 = scalar_select %p1766, %s1765, 47
      %s1768 = smul.addr %s1767, 8
      %s1769 = scalar_lea.vmem %s11, %s1768
      // Predicated region
      $region61: #{tpu_custom_call.1} parent=59 // pred_check
        %p1770 = pneg %p256
      $region62: #{tpu_custom_call.1} parent=59 // pred_check_branch
        %1772 = sbr.rel (%p1770) target = $region64
      $region63: #{tpu_custom_call.1} parent=59 // pred_region
        %s1773 = smul.u32 16, %s23
      $region64: #{tpu_custom_call.1} parent=59 // pred_fallthru
        _
      // Predicated region
      $region65: #{tpu_custom_call.1} parent=59 // pred_check
        %p1774 = pneg %p282
      $region66: #{tpu_custom_call.1} parent=59 // pred_check_branch
        %1776 = sbr.rel (%p1774) target = $region68
      $region67: #{tpu_custom_call.1} parent=59 // pred_region
        %s1777 = smul.u32 16, %s23
      $region68: #{tpu_custom_call.1} parent=59 // pred_fallthru
        _
    $region60: #{tpu_custom_call.1} parent=5 // pred_fallthru
      _
    %p1778 = scmp.le.s32.totalorder 2, %s18
    // Predicated region
    $region69: #{tpu_custom_call.1} parent=5 // pred_check
      %p1779 = pneg %p1778
    $region70: #{tpu_custom_call.1} parent=5 // pred_check_branch
      %1781 = sbr.rel (%p1779) target = $region72
    $region71: #{tpu_custom_call.1} parent=5 // pred_region
      %s1782 = ssub.s32 %s18, 2
      // Predicated region
      $region73: #{tpu_custom_call.1} parent=71 // pred_check
        %p1783 = pneg %p262
      $region74: #{tpu_custom_call.1} parent=71 // pred_check_branch
        %1785 = sbr.rel (%p1783) target = $region76
      $region75: #{tpu_custom_call.1} parent=71 // pred_region
        %s1786 = smul.u32 16, %s24
        %p1787 = scmp.lt.s32.totalorder %s1786, 47
        %s1788 = scalar_select %p1787, %s1786, 47
        %s1789 = smul.addr %s1788, 8
        %s1790 = scalar_lea.vmem %s10, %s1789
      $region76: #{tpu_custom_call.1} parent=71 // pred_fallthru
        _
      // Predicated region
      $region77: #{tpu_custom_call.1} parent=71 // pred_check
        %p1791 = pneg %p288
      $region78: #{tpu_custom_call.1} parent=71 // pred_check_branch
        %1793 = sbr.rel (%p1791) target = $region80
      $region79: #{tpu_custom_call.1} parent=71 // pred_region
        %s1794 = smul.u32 16, %s24
        %p1795 = scmp.lt.s32.totalorder %s1794, 47
        %s1796 = scalar_select %p1795, %s1794, 47
        %s1797 = smul.addr %s1796, 8
        %s1798 = scalar_lea.vmem %s11, %s1797
      $region80: #{tpu_custom_call.1} parent=71 // pred_fallthru
        _
    $region72: #{tpu_custom_call.1} parent=5 // pred_fallthru
      _
  $region6: #{tpu_custom_call.1} parent=0 // loop_footer
    %s22 = sadd.s32 1, %s18
  $region7: #{tpu_custom_call.1} parent=0 // loop_footer_branch
    %17 = sbr.rel target = $region3
  $region8: #{tpu_custom_call.1} parent=0 // loop_exit
    _

</llo_original>
